<compile_context>
chip_gen: v7x
topology: tpu7x:2x2x1
jax: 0.10.0
libtpu: 0.0.40
codegen_flags: <defaults>
</compile_context>

<pallas_src>
import jax
import jax.numpy as jnp
from jax import lax
from jax.experimental import pallas as pl
from jax.experimental.pallas import tpu as pltpu


def _round_up(x, m):
    return ((x + m - 1) // m) * m


def _tpu_vmem_capacity_bytes():
    """Per-core VMEM capacity; conservative fallback = 64 MiB (v7x)."""
    try:
        info = pltpu.get_tpu_info()
        cap = getattr(info, "vmem_capacity_bytes", None)
        if cap:
            return int(cap)
    except Exception:
        pass
    return 64 << 20


def _pick_ff_tile(d_ff_p, tf_req):
    """Largest multiple of 128 <= tf_req that divides d_ff_p (d_ff_p % 128 == 0)."""
    best = min(d_ff_p, 128)
    cand = 128
    while cand <= min(tf_req, d_ff_p):
        if d_ff_p % cand == 0:
            best = cand
        cand += 128
    return best


def _pick_chunk(tf_eff, tc_req=512):
    """Chunk of the in-kernel d_ff loop: bounds the (tm, chunk) hidden temp."""
    for cand in (512, 384, 256, 128):
        if cand <= tc_req and tf_eff % cand == 0:
            return cand
    return tf_eff


def _make_ffn_kernel(n_chunks, tc, precision):
    def ffn_kernel(x_ref, w1_ref, b1_ref, w2_ref, b2_ref, o_ref, acc_ref):
        # x_ref:  (tm, D)       token tile (input dtype, cast here)
        # w1_ref: (D, tf)       W1 tile (compute dtype)      b1_ref: (1, tf) f32
        # w2_ref: (tf, D)       W2 tile (compute dtype)      b2_ref: (1, D)  f32
        # acc_ref:(tm, D) f32   output accumulator across the d_ff grid axis
        k = pl.program_id(1)

        @pl.when(k == 0)
        def _init():
            acc_ref[...] = jnp.zeros_like(acc_ref)

        x = x_ref[...].astype(w1_ref.dtype)
        # Static chunk loop over the VMEM-resident weight tile: no extra DMA,
        # hidden activation bounded to (tm, tc) f32 (+ its compute-dtype cast).
        for j in range(n_chunks):
            lo = j * tc
            w1c = w1_ref[:, pl.ds(lo, tc)]
            b1c = b1_ref[:, pl.ds(lo, tc)]
            w2c = w2_ref[pl.ds(lo, tc), :]
            h = jnp.dot(x, w1c, preferred_element_type=jnp.float32,
                        precision=precision) + b1c
            h = jnp.maximum(h, 0.0)                     # ReLU on the VPU in f32
            acc_ref[...] += jnp.dot(h.astype(w2_ref.dtype), w2c,
                                    preferred_element_type=jnp.float32,
                                    precision=precision)

        @pl.when(k == pl.num_programs(1) - 1)
        def _finalize():
            # b2 added once per output tile (not once per d_ff step).
            o_ref[...] = (acc_ref[...] + b2_ref[...]).astype(o_ref.dtype)

    return ffn_kernel


def positionwise_feed_forward(x, w1, b1, w2, b2, *, tm=None, tf=512,
                              compute_dtype=jnp.bfloat16):
    """x: (batch, seq, d_model). w1: (d_model, d_ff), w2: (d_ff, d_model)."""
    B, S, D = x.shape
    d_ff = w1.shape[1]
    M = B * S
    xsz = jnp.dtype(x.dtype).itemsize
    csz = jnp.dtype(compute_dtype).itemsize

    # ---- per-generation budgets / defaults ---------------------------------
    vmem_cap = _tpu_vmem_capacity_bytes()
    if vmem_cap >= (100 << 20):          # v5e / v6e: 128 MiB physical VMEM
        budget = 100 << 20
        default_tm = 512                 # hide weight-stream DMA under MXU time
        multi_core = False               # single TensorCore per chip
    else:                                # v7x: 64 MiB per TC, 2 TCs per chip
        budget = min(48 << 20, max(vmem_cap - (8 << 20), 16 << 20))
        default_tm = 256
        multi_core = True
    tm_req = tm if tm is not None else default_tm

    # ---- pad d_ff to a lane-aligned multiple of 128 (zero pad -> exact) ----
    d_ff_p = d_ff if d_ff % 128 == 0 else _round_up(d_ff, 128)

    # ---- token tile ---------------------------------------------------------
    if multi_core and M > 8:
        # >= 2 token blocks so the "parallel" axis spans both TensorCores.
        tm_eff = min(tm_req, _round_up(-(-M // 2), 8))
    elif M >= 128:
        tm_eff = min(tm_req, _round_up(M, 128))       # MXU-friendly row count
    else:
        tm_eff = min(tm_req, _round_up(M, 8))

    # ---- VMEM estimate (includes the hidden-chunk temp) ---------------------
    def vmem_est(tm_, tf_, tc_):
        return (2 * tm_ * D * xsz            # x tile, double-buffered
                + 2 * tm_ * D * xsz          # out tile, double-buffered
                + 2 * 2 * D * tf_ * csz      # W1 + W2 tiles, double-buffered
                + 2 * (tf_ + D) * 4          # bias tiles (f32)
                + tm_ * D * 4                # f32 accumulator scratch
                + tm_ * tc_ * (4 + csz))     # hidden chunk (f32 + cast copy)

    # ---- feed-forward tile: weight-resident if it fits the VMEM budget -----
    tc_res = _pick_chunk(d_ff_p)
    if vmem_est(tm_eff, d_ff_p, tc_res) <= budget:
        # Resident: constant weight index_maps -> weights DMA'd once and
        # reused across every token tile (n_ff == 1).
        tf_eff, tc = d_ff_p, tc_res
    else:
        # Streaming: re-fetch weight slices per token tile; shrink tm if needed.
        tf_eff = _pick_ff_tile(d_ff_p, tf)
        tc = _pick_chunk(tf_eff)
        while vmem_est(tm_eff, tf_eff, tc) > budget and tm_eff > 8:
            tm_eff = max(8, _round_up(tm_eff // 2, 8))

    M_pad = _round_up(M, tm_eff)
    n_tok = M_pad // tm_eff
    n_ff = d_ff_p // tf_eff
    n_chunks = tf_eff // tc

    # ---- operand prep --------------------------------------------------------
    x2d = x.reshape(M, D)
    if M_pad != M:
        x2d = jnp.pad(x2d, ((0, M_pad - M), (0, 0)))
    w1c = w1.astype(compute_dtype)                    # (D, d_ff)
    w2c = w2.astype(compute_dtype)                    # (d_ff, D)
    b1f = b1.reshape(1, d_ff).astype(jnp.float32)
    b2f = b2.reshape(1, D).astype(jnp.float32)
    if d_ff_p != d_ff:
        pad = d_ff_p - d_ff
        w1c = jnp.pad(w1c, ((0, 0), (0, pad)))        # zero cols -> relu(0)=0
        w2c = jnp.pad(w2c, ((0, pad), (0, 0)))        # zero rows -> contribute 0
        b1f = jnp.pad(b1f, ((0, 0), (0, pad)))

    # f32 compute path: exact parity via HIGHEST precision on the MXU.
    prec = (lax.Precision.HIGHEST
            if jnp.dtype(compute_dtype) == jnp.float32 else None)

    # ---- scheduling hints ----------------------------------------------------
    flops = 4 * M_pad * D * d_ff_p
    weight_bytes = 2 * D * d_ff_p * csz
    bytes_accessed = (2 * M_pad * D * xsz
                      + (weight_bytes if n_ff == 1 else n_tok * weight_bytes)
                      + (d_ff_p + D) * 4)
    est = vmem_est(tm_eff, tf_eff, tc)
    vmem_limit = int(max(32 << 20, min(budget, est + (8 << 20))))
    vmem_limit = max(vmem_limit, est + (2 << 20))      # never starve the tiles
    vmem_limit = int(min(vmem_limit, vmem_cap))        # never exceed physical

    kernel = _make_ffn_kernel(n_chunks, tc, prec)
    out2d = pl.pallas_call(
        kernel,
        out_shape=jax.ShapeDtypeStruct((M_pad, D), x.dtype),
        grid_spec=pltpu.PrefetchScalarGridSpec(
            num_scalar_prefetch=0,
            grid=(n_tok, n_ff),                 # token axis outer (parallel),
            in_specs=[                          # d_ff reduction inner (arbitrary)
                pl.BlockSpec((tm_eff, D), lambda i, k: (i, 0)),   # x tile
                pl.BlockSpec((D, tf_eff), lambda i, k: (0, k)),   # W1 tile
                pl.BlockSpec((1, tf_eff), lambda i, k: (0, k)),   # b1 tile
                pl.BlockSpec((tf_eff, D), lambda i, k: (k, 0)),   # W2 tile
                pl.BlockSpec((1, D), lambda i, k: (0, 0)),        # b2
            ],
            out_specs=pl.BlockSpec((tm_eff, D), lambda i, k: (i, 0)),
            scratch_shapes=[pltpu.VMEM((tm_eff, D), jnp.float32)],
        ),
        compiler_params=pltpu.CompilerParams(
            dimension_semantics=("parallel", "arbitrary"),
            vmem_limit_bytes=vmem_limit),
        cost_estimate=pl.CostEstimate(flops=flops, transcendentals=0,
                                      bytes_accessed=bytes_accessed),
    )(x2d, w1c, b1f, w2c, b2f)

    return out2d[:M].reshape(B, S, D)


def init_params(key, d_model, d_ff, dtype=jnp.float32):
    """Deterministic nn.Linear-style init; weights stored as (in, out)."""
    k1, k2, k3, k4 = jax.random.split(key, 4)
    bound1 = 1.0 / (d_model ** 0.5)
    bound2 = 1.0 / (d_ff ** 0.5)
    w1 = jax.random.uniform(k1, (d_model, d_ff), dtype, -bound1, bound1)
    b1 = jax.random.uniform(k2, (d_ff,), dtype, -bound1, bound1)
    w2 = jax.random.uniform(k3, (d_ff, d_model), dtype, -bound2, bound2)
    b2 = jax.random.uniform(k4, (d_model,), dtype, -bound2, bound2)
    return w1, b1, w2, b2


if __name__ == "__main__":
    batch, seq, d_model, d_ff = 2, 8, 32, 64

    key = jax.random.PRNGKey(0)
    kx, kp = jax.random.split(key)
    x = jax.random.normal(kx, (batch, seq, d_model), jnp.float32)
    w1, b1, w2, b2 = init_params(kp, d_model, d_ff)

    # pure-JAX reference
    ref = jnp.maximum(x @ w1 + b1, 0.0) @ w2 + b2

    # f32 compute path: exact parity with the reference (HIGHEST precision).
    out_f32 = positionwise_feed_forward(x, w1, b1, w2, b2,
                                        compute_dtype=jnp.float32)
    out_f32 = jax.block_until_ready(out_f32)
    assert out_f32.shape == (batch, seq, d_model)
    assert jnp.allclose(out_f32, ref, atol=1e-5, rtol=1e-5)

    # default fast path: bf16 MXU inputs, f32 accumulation (looser tolerance).
    out_bf16 = positionwise_feed_forward(x, w1, b1, w2, b2)
    out_bf16 = jax.block_until_ready(out_bf16)
    assert out_bf16.shape == (batch, seq, d_model)
    assert jnp.allclose(out_bf16, ref, atol=3e-2, rtol=3e-2)

    print("KERNEL_OK")
</pallas_src>

<mosaic_0001>
module attributes {stable_mosaic.version = 11 : i64} {
  func.func @ffn_kernel(%arg0: i32, %arg1: i32, %arg2: memref<8x32xf32, #tpu.memory_space<vmem>>, %arg3: memref<32x128xf32, #tpu.memory_space<vmem>>, %arg4: memref<1x128xf32, #tpu.memory_space<vmem>>, %arg5: memref<128x32xf32, #tpu.memory_space<vmem>>, %arg6: memref<1x32xf32, #tpu.memory_space<vmem>>, %arg7: memref<8x32xf32, #tpu.memory_space<vmem>>, %arg8: memref<8x32xf32, #tpu.memory_space<vmem>>) attributes {dimension_semantics = [#tpu.dimension_semantics<parallel>, #tpu.dimension_semantics<arbitrary>], iteration_bounds = array<i64: 2, 1>, scalar_prefetch = 0 : i64, scratch_operands = 1 : i64, tpu.core_type = #tpu.core_type<tc>, window_params = [{transform_indices = @transform_0, window_bounds = array<i64: 8, 32>}, {transform_indices = @transform_1, window_bounds = array<i64: 32, 128>}, {transform_indices = @transform_2, window_bounds = array<i64: 1, 128>}, {transform_indices = @transform_3, window_bounds = array<i64: 128, 32>}, {pipeline_mode = #tpu.pipeline_mode<synchronous>, transform_indices = @transform_4, window_bounds = array<i64: 1, 32>}, {transform_indices = @transform_5, window_bounds = array<i64: 8, 32>}]} {
    %c0_i32 = arith.constant 0 : i32
    %0 = arith.cmpi eq, %arg1, %c0_i32 : i32
    %1 = arith.extui %0 : i1 to i32
    %c0_i32_0 = arith.constant 0 : i32
    %2 = arith.cmpi ne, %1, %c0_i32_0 : i32
    scf.if %2 {
      %cst_16 = arith.constant 0.000000e+00 : f32
      %19 = vector.broadcast %cst_16 : f32 to vector<8x32xf32>
      %c0_17 = arith.constant 0 : index
      %c0_18 = arith.constant 0 : index
      %20 = vector.load %arg8[%c0_17, %c0_18] : memref<8x32xf32, #tpu.memory_space<vmem>>, vector<8x32xf32>
      tpu.vector_store %arg8[%c0_17, %c0_18], %19 {strides = array<i32>} : memref<8x32xf32, #tpu.memory_space<vmem>>, vector<8x32xf32>,
    } else {
    }
    %c0 = arith.constant 0 : index
    %c0_1 = arith.constant 0 : index
    %3 = vector.load %arg2[%c0, %c0_1] : memref<8x32xf32, #tpu.memory_space<vmem>>, vector<8x32xf32>
    %c0_2 = arith.constant 0 : index
    %c0_3 = arith.constant 0 : index
    %4 = vector.load %arg3[%c0_2, %c0_3] : memref<32x128xf32, #tpu.memory_space<vmem>>, vector<32x128xf32>
    %c0_4 = arith.constant 0 : index
    %c0_5 = arith.constant 0 : index
    %5 = vector.load %arg4[%c0_4, %c0_5] : memref<1x128xf32, #tpu.memory_space<vmem>>, vector<1x128xf32>
    %c0_6 = arith.constant 0 : index
    %c0_7 = arith.constant 0 : index
    %6 = vector.load %arg5[%c0_6, %c0_7] : memref<128x32xf32, #tpu.memory_space<vmem>>, vector<128x32xf32>
    %cst = arith.constant dense<0.000000e+00> : vector<8x128xf32>
    %7 = tpu.matmul %3, %4, %cst {dimension_numbers = #tpu.dot_dimension_numbers<[1], [0], [0], [1], [0, 0, 1, 1], [], []>, precision = #tpu.contract_precision<fp32>} : vector<8x32xf32>, vector<32x128xf32>, vector<8x128xf32> -> vector<8x128xf32>
    %8 = vector.broadcast %5 : vector<1x128xf32> to vector<8x128xf32>
    %9 = arith.addf %7, %8 : vector<8x128xf32>
    %cst_8 = arith.constant 0.000000e+00 : f32
    %10 = vector.broadcast %cst_8 : f32 to vector<8x128xf32>
    %11 = arith.maximumf %9, %10 : vector<8x128xf32>
    %c0_9 = arith.constant 0 : index
    %c0_10 = arith.constant 0 : index
    %12 = vector.load %arg8[%c0_9, %c0_10] : memref<8x32xf32, #tpu.memory_space<vmem>>, vector<8x32xf32>
    %cst_11 = arith.constant dense<0.000000e+00> : vector<8x32xf32>
    %13 = tpu.matmul %11, %6, %cst_11 {dimension_numbers = #tpu.dot_dimension_numbers<[1], [0], [0], [1], [0, 0, 1, 1], [], []>, precision = #tpu.contract_precision<fp32>} : vector<8x128xf32>, vector<128x32xf32>, vector<8x32xf32> -> vector<8x32xf32>
    %14 = arith.addf %12, %13 : vector<8x32xf32>
    %c0_12 = arith.constant 0 : index
    %c0_13 = arith.constant 0 : index
    %15 = vector.load %arg8[%c0_12, %c0_13] : memref<8x32xf32, #tpu.memory_space<vmem>>, vector<8x32xf32>
    tpu.vector_store %arg8[%c0_12, %c0_13], %14 {strides = array<i32>} : memref<8x32xf32, #tpu.memory_space<vmem>>, vector<8x32xf32>,
    %c0_i32_14 = arith.constant 0 : i32
    %16 = arith.cmpi eq, %arg1, %c0_i32_14 : i32
    %17 = arith.extui %16 : i1 to i32
    %c0_i32_15 = arith.constant 0 : i32
    %18 = arith.cmpi ne, %17, %c0_i32_15 : i32
    scf.if %18 {
      %c0_16 = arith.constant 0 : index
      %c0_17 = arith.constant 0 : index
      %19 = vector.load %arg8[%c0_16, %c0_17] : memref<8x32xf32, #tpu.memory_space<vmem>>, vector<8x32xf32>
      %c0_18 = arith.constant 0 : index
      %c0_19 = arith.constant 0 : index
      %20 = vector.load %arg6[%c0_18, %c0_19] : memref<1x32xf32, #tpu.memory_space<vmem>>, vector<1x32xf32>
      %21 = vector.broadcast %20 : vector<1x32xf32> to vector<8x32xf32>
      %22 = arith.addf %19, %21 : vector<8x32xf32>
      %c0_20 = arith.constant 0 : index
      %c0_21 = arith.constant 0 : index
      %23 = vector.load %arg7[%c0_20, %c0_21] : memref<8x32xf32, #tpu.memory_space<vmem>>, vector<8x32xf32>
      tpu.vector_store %arg7[%c0_20, %c0_21], %22 {strides = array<i32>} : memref<8x32xf32, #tpu.memory_space<vmem>>, vector<8x32xf32>,
    } else {
    }
    return
  }
  func.func @transform_0(%arg0: i32, %arg1: i32) -> (i32, i32) {
    %c0_i32 = arith.constant 0 : i32
    %c0_i32_0 = arith.constant 0 : i32
    return %arg0, %c0_i32 : i32, i32
  }
  func.func @transform_1(%arg0: i32, %arg1: i32) -> (i32, i32) {
    %c0_i32 = arith.constant 0 : i32
    %c0_i32_0 = arith.constant 0 : i32
    return %c0_i32, %arg1 : i32, i32
  }
  func.func @transform_2(%arg0: i32, %arg1: i32) -> (i32, i32) {
    %c0_i32 = arith.constant 0 : i32
    %c0_i32_0 = arith.constant 0 : i32
    return %c0_i32, %arg1 : i32, i32
  }
  func.func @transform_3(%arg0: i32, %arg1: i32) -> (i32, i32) {
    %c0_i32 = arith.constant 0 : i32
    %c0_i32_0 = arith.constant 0 : i32
    return %arg1, %c0_i32 : i32, i32
  }
  func.func @transform_4(%arg0: i32, %arg1: i32) -> (i32, i32) {
    %c0_i32 = arith.constant 0 : i32
    %c0_i32_0 = arith.constant 0 : i32
    %c0_i32_1 = arith.constant 0 : i32
    return %c0_i32, %c0_i32_0 : i32, i32
  }
  func.func @transform_5(%arg0: i32, %arg1: i32) -> (i32, i32) {
    %c0_i32 = arith.constant 0 : i32
    %c0_i32_0 = arith.constant 0 : i32
    return %arg0, %c0_i32 : i32, i32
  }
}

</mosaic_0001>

<llo_original>
// kernel: tpu_custom_call.1
$region0: #{tpu_custom_call.1}
  #allocation0 [shape = 'u32[]', space=smem, size = 0x4, offset = 0x4, fixed_abs, tag = 'smem constant byte address 0x4 - core index']
  #allocation1 [shape = 'u32[144,128]{1,0:T(1,128)}', space=vmem, size = 0x12000, scoped, tag = 'internal scratch']
  #allocation2 [shape = 'f32[8,32]{1,0:T(8,128)}', space=vmem, size = 0x1000, scoped, tag = 'scratch operand']
  %s0 = inlined_call_operand.vmem [shape: f32[16,32], index: 0, kind: input, shape index: {}]
  %s1 = inlined_call_operand.vmem [shape: f32[32,128], index: 1, kind: input, shape index: {}]
  %s2 = inlined_call_operand.vmem [shape: f32[1,128], index: 2, kind: input, shape index: {}]
  %s3 = inlined_call_operand.vmem [shape: f32[128,32], index: 3, kind: input, shape index: {}]
  %s4 = inlined_call_operand.vmem [shape: f32[1,32], index: 4, kind: input, shape index: {}]
  %s5 = inlined_call_operand.hbm [shape: f32[16,32], index: 5, kind: output, shape index: {}]
  %s6 = sld [smem:[#allocation0]]
  $region61: #{tpu_custom_call.1} parent=0
    _
  %s8 = ssub.s32 1, %s6
  %s9 = scalar_select 0, %s8, %s6
  $region1: #{tpu_custom_call.1} parent=0
    #allocation3 [shape = 'u8[8192]{0}', space=vmem, size = 0x2000, scoped, tag = 'output window, operand 0']
    #allocation4 [shape = 's32[2]{0}', space=sflag, size = 0x8, scoped, tag = 'scoped memory for tpu_custom_call.1']
    %10 = vsyncpa [#allocation4], 0
    %s11 = scalar_lea.sflag [#allocation4], 1
    %12 = vsyncpa %s11, 0
    loop: start=0, step=1, limit=4
    $region2: #{tpu_custom_call.1} parent=1 // loop_pre_header
      _
    $region3: #{tpu_custom_call.1} parent=1 // loop_header
      %s14 = sphi 0, %s18
      %p15 = scmp.ge.s32.totalorder %s14, 4
      %s21 = sphi 0, %s33
      %s22 = sphi 0, %s29
      %s23 = sphi 0, %s21
      %s24 = sphi 0, %s22
      %s25 = sphi 0, %s23
      %s26 = sphi 0, %s24
      %s36 = sphi 0, %s38
      %s39 = sphi 0, %s36
      %s40 = sphi 0, %s39
      %s56 = sphi 0, %s40
      %s62 = sphi 0, %s64
      %s65 = sphi 0, %s62
      %s66 = sphi 0, %s65
      %s82 = sphi 0, %s66
      %s88 = sphi 0, %s90
      %s91 = sphi 0, %s88
      %s92 = sphi 0, %s91
      %s108 = sphi 0, %s92
      %s114 = sphi 0, %s116
      %s117 = sphi 0, %s114
      %s118 = sphi 0, %s117
      %s134 = sphi 0, %s118
      %s138 = sphi 0, %s138
      %s140 = sphi 0, %s138
      %s141 = sphi 0, %s140
      %s155 = sphi 0, %s141
      %s161 = sphi 0, %s163
      %s164 = sphi 0, %s161
      %s165 = sphi 0, %s164
      %s181 = sphi 0, %s165
    $region4: #{tpu_custom_call.1} parent=1 // loop_header_branch
      %17 = sbr.rel (%p15) target = $region8
    $region5: #{tpu_custom_call.1} parent=1 // loop_body
      %s19 = ssub.s32 %s14, 1
      %s20 = ssub.s32 %s14, 2
      %s27 = sadd.s32 1, %s22
      %p28 = scmp.ge.s32.totalorder %s27, 1
      %s29 = scalar_select %p28, 0, %s27
      %s30 = sadd.s32 1, %s21
      %s31 = scalar_select %p28, %s30, %s21
      %p32 = scmp.ge.s32.totalorder %s31, 2
      %s33 = scalar_select %p32, 0, %s31
      %s34 = ssub.s32 %s21, %s33
      %p35 = scmp.eq.s32.totalorder %s34, 0
      %s37 = sadd.s32 %s36, 1
      %s38 = scalar_select %p35, %s36, %s37
      %p41 = pneg %p35
      %p42 = scmp.eq.s32.totalorder %s14, 1
      %p43 = por %p41, %p42
      %p44 = scmp.ne.s32.totalorder %s36, %s39
      %p45 = scmp.eq.s32.totalorder %s14, 0
      %p46 = por %p44, %p45
      %p47 = scmp.ne.s32.totalorder %s36, %s39
      %p48 = scmp.eq.s32.totalorder %s19, 1
      %p49 = por %p47, %p48
      %p50 = scmp.ne.s32.totalorder %s39, %s40
      %p51 = scmp.eq.s32.totalorder %s19, 0
      %p52 = por %p50, %p51
      %p53 = scmp.ne.s32.totalorder %s39, %s40
      %p54 = scmp.eq.s32.totalorder %s20, 1
      %p55 = por %p53, %p54
      %p57 = scmp.ne.s32.totalorder %s40, %s56
      %p58 = scmp.eq.s32.totalorder %s20, 0
      %p59 = por %p57, %p58
      %s60 = ssub.s32 %s22, %s29
      %p61 = scmp.eq.s32.totalorder %s60, 0
      %s63 = sadd.s32 %s62, 1
      %s64 = scalar_select %p61, %s62, %s63
      %p67 = pneg %p61
      %p68 = scmp.eq.s32.totalorder %s14, 1
      %p69 = por %p67, %p68
      %p70 = scmp.ne.s32.totalorder %s62, %s65
      %p71 = scmp.eq.s32.totalorder %s14, 0
      %p72 = por %p70, %p71
      %p73 = scmp.ne.s32.totalorder %s62, %s65
      %p74 = scmp.eq.s32.totalorder %s19, 1
      %p75 = por %p73, %p74
      %p76 = scmp.ne.s32.totalorder %s65, %s66
      %p77 = scmp.eq.s32.totalorder %s19, 0
      %p78 = por %p76, %p77
      %p79 = scmp.ne.s32.totalorder %s65, %s66
      %p80 = scmp.eq.s32.totalorder %s20, 1
      %p81 = por %p79, %p80
      %p83 = scmp.ne.s32.totalorder %s66, %s82
      %p84 = scmp.eq.s32.totalorder %s20, 0
      %p85 = por %p83, %p84
      %s86 = ssub.s32 %s22, %s29
      %p87 = scmp.eq.s32.totalorder %s86, 0
      %s89 = sadd.s32 %s88, 1
      %s90 = scalar_select %p87, %s88, %s89
      %p93 = pneg %p87
      %p94 = scmp.eq.s32.totalorder %s14, 1
      %p95 = por %p93, %p94
      %p96 = scmp.ne.s32.totalorder %s88, %s91
      %p97 = scmp.eq.s32.totalorder %s14, 0
      %p98 = por %p96, %p97
      %p99 = scmp.ne.s32.totalorder %s88, %s91
      %p100 = scmp.eq.s32.totalorder %s19, 1
      %p101 = por %p99, %p100
      %p102 = scmp.ne.s32.totalorder %s91, %s92
      %p103 = scmp.eq.s32.totalorder %s19, 0
      %p104 = por %p102, %p103
      %p105 = scmp.ne.s32.totalorder %s91, %s92
      %p106 = scmp.eq.s32.totalorder %s20, 1
      %p107 = por %p105, %p106
      %p109 = scmp.ne.s32.totalorder %s92, %s108
      %p110 = scmp.eq.s32.totalorder %s20, 0
      %p111 = por %p109, %p110
      %s112 = ssub.s32 %s22, %s29
      %p113 = scmp.eq.s32.totalorder %s112, 0
      %s115 = sadd.s32 %s114, 1
      %s116 = scalar_select %p113, %s114, %s115
      %p119 = pneg %p113
      %p120 = scmp.eq.s32.totalorder %s14, 1
      %p121 = por %p119, %p120
      %p122 = scmp.ne.s32.totalorder %s114, %s117
      %p123 = scmp.eq.s32.totalorder %s14, 0
      %p124 = por %p122, %p123
      %p125 = scmp.ne.s32.totalorder %s114, %s117
      %p126 = scmp.eq.s32.totalorder %s19, 1
      %p127 = por %p125, %p126
      %p128 = scmp.ne.s32.totalorder %s117, %s118
      %p129 = scmp.eq.s32.totalorder %s19, 0
      %p130 = por %p128, %p129
      %p131 = scmp.ne.s32.totalorder %s117, %s118
      %p132 = scmp.eq.s32.totalorder %s20, 1
      %p133 = por %p131, %p132
      %p135 = scmp.ne.s32.totalorder %s118, %s134
      %p136 = scmp.eq.s32.totalorder %s20, 0
      %p137 = por %p135, %p136
      %s139 = sadd.s32 %s138, 1
      %p142 = scmp.eq.s32.totalorder %s14, 1
      %p143 = scmp.ne.s32.totalorder %s138, %s140
      %p144 = scmp.eq.s32.totalorder %s14, 0
      %p145 = por %p143, %p144
      %p146 = scmp.ne.s32.totalorder %s138, %s140
      %p147 = scmp.eq.s32.totalorder %s19, 1
      %p148 = por %p146, %p147
      %p149 = scmp.ne.s32.totalorder %s140, %s141
      %p150 = scmp.eq.s32.totalorder %s19, 0
      %p151 = por %p149, %p150
      %p152 = scmp.ne.s32.totalorder %s140, %s141
      %p153 = scmp.eq.s32.totalorder %s20, 1
      %p154 = por %p152, %p153
      %p156 = scmp.ne.s32.totalorder %s141, %s155
      %p157 = scmp.eq.s32.totalorder %s20, 0
      %p158 = por %p156, %p157
      %s159 = ssub.s32 %s21, %s33
      %p160 = scmp.eq.s32.totalorder %s159, 0
      %s162 = sadd.s32 %s161, 1
      %s163 = scalar_select %p160, %s161, %s162
      %p166 = pneg %p160
      %p167 = scmp.eq.s32.totalorder %s14, 1
      %p168 = por %p166, %p167
      %p169 = scmp.ne.s32.totalorder %s161, %s164
      %p170 = scmp.eq.s32.totalorder %s14, 0
      %p171 = por %p169, %p170
      %p172 = scmp.ne.s32.totalorder %s161, %s164
      %p173 = scmp.eq.s32.totalorder %s19, 1
      %p174 = por %p172, %p173
      %p175 = scmp.ne.s32.totalorder %s164, %s165
      %p176 = scmp.eq.s32.totalorder %s19, 0
      %p177 = por %p175, %p176
      %p178 = scmp.ne.s32.totalorder %s164, %s165
      %p179 = scmp.eq.s32.totalorder %s20, 1
      %p180 = por %p178, %p179
      %p182 = scmp.ne.s32.totalorder %s165, %s181
      %p183 = scmp.eq.s32.totalorder %s20, 0
      %p184 = por %p182, %p183
      %p185 = scmp.le.s32.totalorder 1, %s14
      %p186 = scmp.lt.s32.totalorder %s14, 3
      %p187 = pnand %p185, %p186
      %p188 = pneg %p187
      // Predicated region
      $region9: #{tpu_custom_call.1} parent=5 // pred_check
        _
      $region10: #{tpu_custom_call.1} parent=5 // pred_check_branch
        %190 = sbr.rel (%p187) target = $region12
      $region11: #{tpu_custom_call.1} parent=5 // pred_region
        %s191 = ssub.s32 %s14, 1
        // Predicated region
        $region13: #{tpu_custom_call.1} parent=11 // pred_check
          %p192 = pneg %p78
        $region14: #{tpu_custom_call.1} parent=11 // pred_check_branch
          %194 = sbr.rel (%p192) target = $region16
        $region15: #{tpu_custom_call.1} parent=11 // pred_region
          %p195 = scmp.lt.s32.totalorder %s24, 0
          %s196 = scalar_select %p195, %s24, 0
          %s197 = smul.addr %s196, 8
          %s198 = scalar_lea.vmem %s1, %s197
        $region16: #{tpu_custom_call.1} parent=11 // pred_fallthru
          _
        // Predicated region
        $region17: #{tpu_custom_call.1} parent=11 // pred_check
          %p199 = pneg %p104
        $region18: #{tpu_custom_call.1} parent=11 // pred_check_branch
          %201 = sbr.rel (%p199) target = $region20
        $region19: #{tpu_custom_call.1} parent=11 // pred_region
          %p202 = scmp.lt.s32.totalorder %s24, 0
          %s203 = scalar_select %p202, %s24, 0
          %s204 = scalar_lea.vmem %s2, %s203
        $region20: #{tpu_custom_call.1} parent=11 // pred_fallthru
          _
        // Predicated region
        $region21: #{tpu_custom_call.1} parent=11 // pred_check
          %p205 = pneg %p130
        $region22: #{tpu_custom_call.1} parent=11 // pred_check_branch
          %207 = sbr.rel (%p205) target = $region24
        $region23: #{tpu_custom_call.1} parent=11 // pred_region
          %s208 = smul.u32 16, %s24
          %p209 = scmp.lt.s32.totalorder %s208, 15
          %s210 = scalar_select %p209, %s208, 15
          %s211 = smul.addr %s210, 8
          %s212 = scalar_lea.vmem %s3, %s211
          %s213 = smul.u32 16, %s24
        $region24: #{tpu_custom_call.1} parent=11 // pred_fallthru
          _
        // Predicated region
        $region25: #{tpu_custom_call.1} parent=11 // pred_check
          %p214 = pneg %p151
        $region26: #{tpu_custom_call.1} parent=11 // pred_check_branch
          %216 = sbr.rel (%p214) target = $region28
        $region27: #{tpu_custom_call.1} parent=11 // pred_region
          _
        $region28: #{tpu_custom_call.1} parent=11 // pred_fallthru
          _
      $region12: #{tpu_custom_call.1} parent=5 // pred_fallthru
        _
      %p217 = scmp.lt.s32.totalorder %s14, 2
      // Predicated region
      $region29: #{tpu_custom_call.1} parent=5 // pred_check
        %p218 = pneg %p217
      $region30: #{tpu_custom_call.1} parent=5 // pred_check_branch
        %220 = sbr.rel (%p218) target = $region32
      $region31: #{tpu_custom_call.1} parent=5 // pred_region
        // Predicated region
        $region33: #{tpu_custom_call.1} parent=31 // pred_check
          %p221 = pneg %p46
        $region34: #{tpu_custom_call.1} parent=31 // pred_check_branch
          %223 = sbr.rel (%p221) target = $region36
        $region35: #{tpu_custom_call.1} parent=31 // pred_region
          %p224 = scmp.lt.s32.totalorder %s21, 1
          %s225 = scalar_select %p224, %s21, 1
          %s226 = smul.addr %s225, 8
          %s227 = scalar_lea.vmem %s0, %s226
        $region36: #{tpu_custom_call.1} parent=31 // pred_fallthru
          _
      $region32: #{tpu_custom_call.1} parent=5 // pred_fallthru
        _
      %p228 = scmp.le.s32.totalorder 1, %s14
      %p229 = scmp.lt.s32.totalorder %s14, 3
      %p230 = pnand %p228, %p229
      %p231 = pneg %p230
      // Predicated region
      $region37: #{tpu_custom_call.1} parent=5 // pred_check
        _
      $region38: #{tpu_custom_call.1} parent=5 // pred_check_branch
        %233 = sbr.rel (%p230) target = $region40
      $region39: #{tpu_custom_call.1} parent=5 // pred_region
        %s234 = ssub.s32 %s14, 1
        %p235 = scmp.lt.s32.totalorder %s23, 1
        %s236 = scalar_select %p235, %s23, 1
        %s237 = smul.addr %s236, 8
        %s238 = scalar_lea.vmem %s0, %s237
        %p239 = pneg %p52
        %p240 = pneg %p49
        %p241 = scmp.lt.s32.totalorder %s24, 0
        %s242 = scalar_select %p241, %s24, 0
        %s243 = smul.addr %s242, 8
        %s244 = scalar_lea.vmem %s1, %s243
        %p245 = pneg %p78
        %p246 = pneg %p75
        %p247 = scmp.lt.s32.totalorder %s24, 0
        %s248 = scalar_select %p247, %s24, 0
        %s249 = scalar_lea.vmem %s2, %s248
        %p250 = pneg %p104
        %p251 = pneg %p101
        %s252 = smul.u32 16, %s24
        %p253 = scmp.lt.s32.totalorder %s252, 15
        %s254 = scalar_select %p253, %s252, 15
        %s255 = smul.addr %s254, 8
        %s256 = scalar_lea.vmem %s3, %s255
        %p257 = pneg %p130
        %p258 = pneg %p127
        %p259 = pneg %p151
        %p260 = pneg %p148
        %p261 = pneg %p177
        %p262 = pneg %p174
        %s263 = sand.u32 %s164, 1
        %s264 = scalar_lea.sflag [#allocation4], %s263
        %s265 = sand.u32 %s164, 1
        %s266 = smul.addr %s265, 8
        %s267 = scalar_lea.vmem [#allocation3], %s266
        %p268 = scmp.lt.s32.totalorder %s23, 1
        %s269 = scalar_select %p268, %s23, 1
        %s270 = smul.addr %s269, 8
        %s271 = scalar_lea.vmem %s0, %s270
        %p272 = scmp.lt.s32.totalorder %s24, 0
        %s273 = scalar_select %p272, %s24, 0
        %s274 = smul.addr %s273, 8
        %s275 = scalar_lea.vmem %s1, %s274
        %p276 = scmp.lt.s32.totalorder %s24, 0
        %s277 = scalar_select %p276, %s24, 0
        %s278 = scalar_lea.vmem %s2, %s277
        %s279 = smul.u32 16, %s24
        %p280 = scmp.lt.s32.totalorder %s279, 15
        %s281 = scalar_select %p280, %s279, 15
        %s282 = smul.addr %s281, 8
        %s283 = scalar_lea.vmem %s3, %s282
        %s284 = smul.u32 16, %s24
        %p285 = scmp.eq.s32.totalorder %s24, 0
        // Predicated region
        $region41: #{tpu_custom_call.1} parent=39 // pred_check
          %p286 = pneg %p285
        $region42: #{tpu_custom_call.1} parent=39 // pred_check_branch
          %288 = sbr.rel (%p286) target = $region44
        $region43: #{tpu_custom_call.1} parent=39 // pred_region
          %vm289 = vcmask 261120
          %290 = vst.msk [vmem:[#allocation2] sm:$0xff] %vm289, 0.0
        $region44: #{tpu_custom_call.1} parent=39 // pred_fallthru
          _
        %v291 = vld [vmem:[%s271] sm:$0xff]
        %v292 = vld [vmem:[%s275] sm:$0xff]
        %v293 = vld [vmem:[%s275 + $0x8] sm:$0xff]
        %v294 = vld [vmem:[%s275 + $0x10] sm:$0xff]
        %v295 = vld [vmem:[%s275 + $0x18] sm:$0xff]
        %v296 = vld [vmem:[%s278] sm:$0x1]
        %v297 = vld [vmem:[%s283] sm:$0xff]
        %v298 = vld [vmem:[%s283 + $0x8] sm:$0xff]
        %v299 = vld [vmem:[%s283 + $0x10] sm:$0xff]
        %v300 = vld [vmem:[%s283 + $0x18] sm:$0xff]
        %v301 = vld [vmem:[%s283 + $0x20] sm:$0xff]
        %v302 = vld [vmem:[%s283 + $0x28] sm:$0xff]
        %v303 = vld [vmem:[%s283 + $0x30] sm:$0xff]
        %v304 = vld [vmem:[%s283 + $0x38] sm:$0xff]
        %v305 = vld [vmem:[%s283 + $0x40] sm:$0xff]
        %v306 = vld [vmem:[%s283 + $0x48] sm:$0xff]
        %v307 = vld [vmem:[%s283 + $0x50] sm:$0xff]
        %v308 = vld [vmem:[%s283 + $0x58] sm:$0xff]
        %v309 = vld [vmem:[%s283 + $0x60] sm:$0xff]
        %v310 = vld [vmem:[%s283 + $0x68] sm:$0xff]
        %v311 = vld [vmem:[%s283 + $0x70] sm:$0xff]
        %v312 = vld [vmem:[%s283 + $0x78] sm:$0xff]
        %v314 = vlaneseq
        %v315 = vshrl.u32 %v314, 7
        %v316 = vsub.s32 0, %v315
        %v317 = vrot.slane %v296, %v316
        %vm319 = vcmask 261120
        %v321 = vsel %vm319, %v291, 0
        %323 = vmatprep.subr.mxu0 0.0
        %v324 = vand.u32 %v292, 4294901760
        %325 = vmatpush1.msra.mxu0 %v324
        %326 = vmatprep.subr.mxu0 0.0
        %v327 = vand.u32 %v293, 4294901760
        %328 = vmatpush1.msra.mxu0 %v327
        %329 = vmatprep.subr.mxu0 0.0
        %v330 = vand.u32 %v294, 4294901760
        %331 = vmatpush1.msra.mxu0 %v330
        %332 = vmatprep.subr.mxu0 0.0
        %v333 = vand.u32 %v295, 4294901760
        %334 = vmatpush1.msra.mxu0 %v333
        %335 = vmatprep.subr.mxu0 0.0
        %336 = vmatpush1.msra.mxu0 0.0
        %337 = vmatprep.subr.mxu0 0.0
        %338 = vmatpush1.msra.mxu0 0.0
        %339 = vmatprep.subr.mxu0 0.0
        %340 = vmatpush1.msra.mxu0 0.0
        %341 = vmatprep.subr.mxu0 0.0
        %342 = vmatpush1.msra.mxu0 0.0
        %343 = vmatprep.subr.mxu0 0.0
        %344 = vmatpush1.msra.mxu0 0.0
        %345 = vmatprep.subr.mxu0 0.0
        %346 = vmatpush1.msra.mxu0 0.0
        %347 = vmatprep.subr.mxu0 0.0
        %348 = vmatpush1.msra.mxu0 0.0
        %349 = vmatprep.subr.mxu0 0.0
        %350 = vmatpush1.msra.mxu0 0.0
        %351 = vmatprep.subr.mxu0 0.0
        %352 = vmatpush1.msra.mxu0 0.0
        %353 = vmatprep.subr.mxu0 0.0
        %354 = vmatpush1.msra.mxu0 0.0
        %355 = vmatprep.subr.mxu0 0.0
        %356 = vmatpush1.msra.mxu0 0.0
        %357 = vmatprep.subr.mxu0 0.0
        %358 = vmatpush1.msra.mxu0 0.0
        %359 = vmatprep.subr.mxu0 0.0
        %360 = vmatpush1.msra.mxu0 0.0
        %361 = vmatprep.subr.mxu0 0.0
        %362 = vmatpush1.msra.mxu0 0.0
        %363 = vmatprep.subr.mxu0 0.0
        %364 = vmatpush1.msra.mxu0 0.0
        %365 = vmatprep.subr.mxu0 0.0
        %366 = vmatpush1.msra.mxu0 0.0
        %367 = vmatprep.subr.mxu0 0.0
        %368 = vmatpush1.msra.mxu0 0.0
        %369 = vmatprep.subr.mxu0 0.0
        %370 = vmatpush1.msra.mxu0 0.0
        %371 = vmatprep.subr.mxu0 0.0
        %372 = vmatpush1.msra.mxu0 0.0
        %373 = vmatprep.subr.mxu0 0.0
        %374 = vmatpush1.msra.mxu0 0.0
        %375 = vmatprep.subr.mxu0 0.0
        %376 = vmatpush1.msra.mxu0 0.0
        %377 = vmatprep.subr.mxu0 0.0
        %378 = vmatpush1.msra.mxu0 0.0
        %379 = vmatprep.subr.mxu0 0.0
        %380 = vmatpush1.msra.mxu0 0.0
        %381 = vmatprep.subr.mxu0 0.0
        %382 = vmatpush1.msra.mxu0 0.0
        %383 = vmatprep.subr.mxu0 0.0
        %384 = vmatpush1.msra.mxu0 0.0
        %385 = vmatprep.subr.mxu0 0.0
        %386 = vmatpush1.msra.mxu0 0.0
        %387 = vmatprep.subr.mxu0 0.0
        %388 = vmatpush1.msra.mxu0 0.0
        %389 = vmatprep.subr.mxu0 0.0
        %390 = vmatpush1.msra.mxu0 0.0
        %391 = vmatprep.mubr.f32.mxu0 0.0
        %v392 = vand.u32 %v321, 4294901760
        %v393 = vsub.f32 %v321, %v392
        %v394 = vand.u32 %v393, 4294901760
        %v395 = vsub.f32 %v393, %v394
        %v396 = vand.u32 %v395, 4294901760
        %397 = vmatmul.mubr.f32.gmra.mrb[0].mxu0 %v396
        %v398 = vpop.f32.mrb[0].mxu0
        %v399 = vadd.f32 %v317, %v398
        %v400 = vpop.f32.mrb[0].mxu0
        %401 = vdwg.mxu0
        %402 = vmatprep.subr.mxu0 0.0
        %v403 = vand.u32 %v292, 4294901760
        %v404 = vsub.f32 %v292, %v403
        %v405 = vand.u32 %v404, 4294901760
        %v406 = vsub.f32 %v404, %v405
        %v407 = vand.u32 %v406, 4294901760
        %408 = vmatpush1.msra.mxu0 %v407
        %409 = vmatprep.subr.mxu0 0.0
        %v410 = vand.u32 %v293, 4294901760
        %v411 = vsub.f32 %v293, %v410
        %v412 = vand.u32 %v411, 4294901760
        %v413 = vsub.f32 %v411, %v412
        %v414 = vand.u32 %v413, 4294901760
        %415 = vmatpush1.msra.mxu0 %v414
        %416 = vmatprep.subr.mxu0 0.0
        %v417 = vand.u32 %v294, 4294901760
        %v418 = vsub.f32 %v294, %v417
        %v419 = vand.u32 %v418, 4294901760
        %v420 = vsub.f32 %v418, %v419
        %v421 = vand.u32 %v420, 4294901760
        %422 = vmatpush1.msra.mxu0 %v421
        %423 = vmatprep.subr.mxu0 0.0
        %v424 = vand.u32 %v295, 4294901760
        %v425 = vsub.f32 %v295, %v424
        %v426 = vand.u32 %v425, 4294901760
        %v427 = vsub.f32 %v425, %v426
        %v428 = vand.u32 %v427, 4294901760
        %429 = vmatpush1.msra.mxu0 %v428
        %430 = vmatprep.subr.mxu0 0.0
        %431 = vmatpush1.msra.mxu0 0.0
        %432 = vmatprep.subr.mxu0 0.0
        %433 = vmatpush1.msra.mxu0 0.0
        %434 = vmatprep.subr.mxu0 0.0
        %435 = vmatpush1.msra.mxu0 0.0
        %436 = vmatprep.subr.mxu0 0.0
        %437 = vmatpush1.msra.mxu0 0.0
        %438 = vmatprep.subr.mxu0 0.0
        %439 = vmatpush1.msra.mxu0 0.0
        %440 = vmatprep.subr.mxu0 0.0
        %441 = vmatpush1.msra.mxu0 0.0
        %442 = vmatprep.subr.mxu0 0.0
        %443 = vmatpush1.msra.mxu0 0.0
        %444 = vmatprep.subr.mxu0 0.0
        %445 = vmatpush1.msra.mxu0 0.0
        %446 = vmatprep.subr.mxu0 0.0
        %447 = vmatpush1.msra.mxu0 0.0
        %448 = vmatprep.subr.mxu0 0.0
        %449 = vmatpush1.msra.mxu0 0.0
        %450 = vmatprep.subr.mxu0 0.0
        %451 = vmatpush1.msra.mxu0 0.0
        %452 = vmatprep.subr.mxu0 0.0
        %453 = vmatpush1.msra.mxu0 0.0
        %454 = vmatprep.subr.mxu0 0.0
        %455 = vmatpush1.msra.mxu0 0.0
        %456 = vmatprep.subr.mxu0 0.0
        %457 = vmatpush1.msra.mxu0 0.0
        %458 = vmatprep.subr.mxu0 0.0
        %459 = vmatpush1.msra.mxu0 0.0
        %460 = vmatprep.subr.mxu0 0.0
        %461 = vmatpush1.msra.mxu0 0.0
        %462 = vmatprep.subr.mxu0 0.0
        %463 = vmatpush1.msra.mxu0 0.0
        %464 = vmatprep.subr.mxu0 0.0
        %465 = vmatpush1.msra.mxu0 0.0
        %466 = vmatprep.subr.mxu0 0.0
        %467 = vmatpush1.msra.mxu0 0.0
        %468 = vmatprep.subr.mxu0 0.0
        %469 = vmatpush1.msra.mxu0 0.0
        %470 = vmatprep.subr.mxu0 0.0
        %471 = vmatpush1.msra.mxu0 0.0
        %472 = vmatprep.subr.mxu0 0.0
        %473 = vmatpush1.msra.mxu0 0.0
        %474 = vmatprep.subr.mxu0 0.0
        %475 = vmatpush1.msra.mxu0 0.0
        %476 = vmatprep.subr.mxu0 0.0
        %477 = vmatpush1.msra.mxu0 0.0
        %478 = vmatprep.subr.mxu0 0.0
        %479 = vmatpush1.msra.mxu0 0.0
        %480 = vmatprep.subr.mxu0 0.0
        %481 = vmatpush1.msra.mxu0 0.0
        %482 = vmatprep.subr.mxu0 0.0
        %483 = vmatpush1.msra.mxu0 0.0
        %484 = vmatprep.subr.mxu0 0.0
        %485 = vmatpush1.msra.mxu0 0.0
        %486 = vmatprep.mubr.f32.mxu0 0.0
        %v487 = vand.u32 %v321, 4294901760
        %488 = vmatmul.mubr.f32.gmra.mrb[0].mxu0 %v487
        %v489 = vpop.f32.mrb[0].mxu0
        %v490 = vadd.f32 %v399, %v489
        %v491 = vpop.f32.mrb[0].mxu0
        %492 = vdwg.mxu0
        %493 = vmatprep.subr.mxu0 0.0
        %v494 = vand.u32 %v292, 4294901760
        %v495 = vsub.f32 %v292, %v494
        %496 = vmatpush1.msra.mxu0 %v495
        %497 = vmatprep.subr.mxu0 0.0
        %v498 = vand.u32 %v293, 4294901760
        %v499 = vsub.f32 %v293, %v498
        %500 = vmatpush1.msra.mxu0 %v499
        %501 = vmatprep.subr.mxu0 0.0
        %v502 = vand.u32 %v294, 4294901760
        %v503 = vsub.f32 %v294, %v502
        %504 = vmatpush1.msra.mxu0 %v503
        %505 = vmatprep.subr.mxu0 0.0
        %v506 = vand.u32 %v295, 4294901760
        %v507 = vsub.f32 %v295, %v506
        %508 = vmatpush1.msra.mxu0 %v507
        %509 = vmatprep.subr.mxu0 0.0
        %510 = vmatpush1.msra.mxu0 0.0
        %511 = vmatprep.subr.mxu0 0.0
        %512 = vmatpush1.msra.mxu0 0.0
        %513 = vmatprep.subr.mxu0 0.0
        %514 = vmatpush1.msra.mxu0 0.0
        %515 = vmatprep.subr.mxu0 0.0
        %516 = vmatpush1.msra.mxu0 0.0
        %517 = vmatprep.subr.mxu0 0.0
        %518 = vmatpush1.msra.mxu0 0.0
        %519 = vmatprep.subr.mxu0 0.0
        %520 = vmatpush1.msra.mxu0 0.0
        %521 = vmatprep.subr.mxu0 0.0
        %522 = vmatpush1.msra.mxu0 0.0
        %523 = vmatprep.subr.mxu0 0.0
        %524 = vmatpush1.msra.mxu0 0.0
        %525 = vmatprep.subr.mxu0 0.0
        %526 = vmatpush1.msra.mxu0 0.0
        %527 = vmatprep.subr.mxu0 0.0
        %528 = vmatpush1.msra.mxu0 0.0
        %529 = vmatprep.subr.mxu0 0.0
        %530 = vmatpush1.msra.mxu0 0.0
        %531 = vmatprep.subr.mxu0 0.0
        %532 = vmatpush1.msra.mxu0 0.0
        %533 = vmatprep.subr.mxu0 0.0
        %534 = vmatpush1.msra.mxu0 0.0
        %535 = vmatprep.subr.mxu0 0.0
        %536 = vmatpush1.msra.mxu0 0.0
        %537 = vmatprep.subr.mxu0 0.0
        %538 = vmatpush1.msra.mxu0 0.0
        %539 = vmatprep.subr.mxu0 0.0
        %540 = vmatpush1.msra.mxu0 0.0
        %541 = vmatprep.subr.mxu0 0.0
        %542 = vmatpush1.msra.mxu0 0.0
        %543 = vmatprep.subr.mxu0 0.0
        %544 = vmatpush1.msra.mxu0 0.0
        %545 = vmatprep.subr.mxu0 0.0
        %546 = vmatpush1.msra.mxu0 0.0
        %547 = vmatprep.subr.mxu0 0.0
        %548 = vmatpush1.msra.mxu0 0.0
        %549 = vmatprep.subr.mxu0 0.0
        %550 = vmatpush1.msra.mxu0 0.0
        %551 = vmatprep.subr.mxu0 0.0
        %552 = vmatpush1.msra.mxu0 0.0
        %553 = vmatprep.subr.mxu0 0.0
        %554 = vmatpush1.msra.mxu0 0.0
        %555 = vmatprep.subr.mxu0 0.0
        %556 = vmatpush1.msra.mxu0 0.0
        %557 = vmatprep.subr.mxu0 0.0
        %558 = vmatpush1.msra.mxu0 0.0
        %559 = vmatprep.subr.mxu0 0.0
        %560 = vmatpush1.msra.mxu0 0.0
        %561 = vmatprep.subr.mxu0 0.0
        %562 = vmatpush1.msra.mxu0 0.0
        %563 = vmatprep.subr.mxu0 0.0
        %564 = vmatpush1.msra.mxu0 0.0
        %565 = vmatprep.mubr.f32.mxu0 0.0
        %v566 = vand.u32 %v321, 4294901760
        %v567 = vsub.f32 %v321, %v566
        %568 = vmatmul.mubr.f32.gmra.mrb[0].mxu0 %v567
        %v569 = vpop.f32.mrb[0].mxu0
        %v570 = vadd.f32 %v490, %v569
        %v571 = vpop.f32.mrb[0].mxu0
        %572 = vdwg.mxu0
        %573 = vmatprep.subr.mxu0 0.0
        %v574 = vand.u32 %v292, 4294901760
        %575 = vmatpush1.msra.mxu0 %v574
        %576 = vmatprep.subr.mxu0 0.0
        %v577 = vand.u32 %v293, 4294901760
        %578 = vmatpush1.msra.mxu0 %v577
        %579 = vmatprep.subr.mxu0 0.0
        %v580 = vand.u32 %v294, 4294901760
        %581 = vmatpush1.msra.mxu0 %v580
        %582 = vmatprep.subr.mxu0 0.0
        %v583 = vand.u32 %v295, 4294901760
        %584 = vmatpush1.msra.mxu0 %v583
        %585 = vmatprep.subr.mxu0 0.0
        %586 = vmatpush1.msra.mxu0 0.0
        %587 = vmatprep.subr.mxu0 0.0
        %588 = vmatpush1.msra.mxu0 0.0
        %589 = vmatprep.subr.mxu0 0.0
        %590 = vmatpush1.msra.mxu0 0.0
        %591 = vmatprep.subr.mxu0 0.0
        %592 = vmatpush1.msra.mxu0 0.0
        %593 = vmatprep.subr.mxu0 0.0
        %594 = vmatpush1.msra.mxu0 0.0
        %595 = vmatprep.subr.mxu0 0.0
        %596 = vmatpush1.msra.mxu0 0.0
        %597 = vmatprep.subr.mxu0 0.0
        %598 = vmatpush1.msra.mxu0 0.0
        %599 = vmatprep.subr.mxu0 0.0
        %600 = vmatpush1.msra.mxu0 0.0
        %601 = vmatprep.subr.mxu0 0.0
        %602 = vmatpush1.msra.mxu0 0.0
        %603 = vmatprep.subr.mxu0 0.0
        %604 = vmatpush1.msra.mxu0 0.0
        %605 = vmatprep.subr.mxu0 0.0
        %606 = vmatpush1.msra.mxu0 0.0
        %607 = vmatprep.subr.mxu0 0.0
        %608 = vmatpush1.msra.mxu0 0.0
        %609 = vmatprep.subr.mxu0 0.0
        %610 = vmatpush1.msra.mxu0 0.0
        %611 = vmatprep.subr.mxu0 0.0
        %612 = vmatpush1.msra.mxu0 0.0
        %613 = vmatprep.subr.mxu0 0.0
        %614 = vmatpush1.msra.mxu0 0.0
        %615 = vmatprep.subr.mxu0 0.0
        %616 = vmatpush1.msra.mxu0 0.0
        %617 = vmatprep.subr.mxu0 0.0
        %618 = vmatpush1.msra.mxu0 0.0
        %619 = vmatprep.subr.mxu0 0.0
        %620 = vmatpush1.msra.mxu0 0.0
        %621 = vmatprep.subr.mxu0 0.0
        %622 = vmatpush1.msra.mxu0 0.0
        %623 = vmatprep.subr.mxu0 0.0
        %624 = vmatpush1.msra.mxu0 0.0
        %625 = vmatprep.subr.mxu0 0.0
        %626 = vmatpush1.msra.mxu0 0.0
        %627 = vmatprep.subr.mxu0 0.0
        %628 = vmatpush1.msra.mxu0 0.0
        %629 = vmatprep.subr.mxu0 0.0
        %630 = vmatpush1.msra.mxu0 0.0
        %631 = vmatprep.subr.mxu0 0.0
        %632 = vmatpush1.msra.mxu0 0.0
        %633 = vmatprep.subr.mxu0 0.0
        %634 = vmatpush1.msra.mxu0 0.0
        %635 = vmatprep.subr.mxu0 0.0
        %636 = vmatpush1.msra.mxu0 0.0
        %637 = vmatprep.subr.mxu0 0.0
        %638 = vmatpush1.msra.mxu0 0.0
        %639 = vmatprep.subr.mxu0 0.0
        %640 = vmatpush1.msra.mxu0 0.0
        %641 = vmatprep.mubr.f32.mxu0 0.0
        %v642 = vand.u32 %v321, 4294901760
        %v643 = vsub.f32 %v321, %v642
        %v644 = vand.u32 %v643, 4294901760
        %645 = vmatmul.mubr.f32.gmra.mrb[0].mxu0 %v644
        %v646 = vpop.f32.mrb[0].mxu0
        %v647 = vadd.f32 %v570, %v646
        %v648 = vpop.f32.mrb[0].mxu0
        %649 = vdwg.mxu0
        %650 = vmatprep.subr.mxu0 0.0
        %v651 = vand.u32 %v292, 4294901760
        %v652 = vsub.f32 %v292, %v651
        %v653 = vand.u32 %v652, 4294901760
        %654 = vmatpush1.msra.mxu0 %v653
        %655 = vmatprep.subr.mxu0 0.0
        %v656 = vand.u32 %v293, 4294901760
        %v657 = vsub.f32 %v293, %v656
        %v658 = vand.u32 %v657, 4294901760
        %659 = vmatpush1.msra.mxu0 %v658
        %660 = vmatprep.subr.mxu0 0.0
        %v661 = vand.u32 %v294, 4294901760
        %v662 = vsub.f32 %v294, %v661
        %v663 = vand.u32 %v662, 4294901760
        %664 = vmatpush1.msra.mxu0 %v663
        %665 = vmatprep.subr.mxu0 0.0
        %v666 = vand.u32 %v295, 4294901760
        %v667 = vsub.f32 %v295, %v666
        %v668 = vand.u32 %v667, 4294901760
        %669 = vmatpush1.msra.mxu0 %v668
        %670 = vmatprep.subr.mxu0 0.0
        %671 = vmatpush1.msra.mxu0 0.0
        %672 = vmatprep.subr.mxu0 0.0
        %673 = vmatpush1.msra.mxu0 0.0
        %674 = vmatprep.subr.mxu0 0.0
        %675 = vmatpush1.msra.mxu0 0.0
        %676 = vmatprep.subr.mxu0 0.0
        %677 = vmatpush1.msra.mxu0 0.0
        %678 = vmatprep.subr.mxu0 0.0
        %679 = vmatpush1.msra.mxu0 0.0
        %680 = vmatprep.subr.mxu0 0.0
        %681 = vmatpush1.msra.mxu0 0.0
        %682 = vmatprep.subr.mxu0 0.0
        %683 = vmatpush1.msra.mxu0 0.0
        %684 = vmatprep.subr.mxu0 0.0
        %685 = vmatpush1.msra.mxu0 0.0
        %686 = vmatprep.subr.mxu0 0.0
        %687 = vmatpush1.msra.mxu0 0.0
        %688 = vmatprep.subr.mxu0 0.0
        %689 = vmatpush1.msra.mxu0 0.0
        %690 = vmatprep.subr.mxu0 0.0
        %691 = vmatpush1.msra.mxu0 0.0
        %692 = vmatprep.subr.mxu0 0.0
        %693 = vmatpush1.msra.mxu0 0.0
        %694 = vmatprep.subr.mxu0 0.0
        %695 = vmatpush1.msra.mxu0 0.0
        %696 = vmatprep.subr.mxu0 0.0
        %697 = vmatpush1.msra.mxu0 0.0
        %698 = vmatprep.subr.mxu0 0.0
        %699 = vmatpush1.msra.mxu0 0.0
        %700 = vmatprep.subr.mxu0 0.0
        %701 = vmatpush1.msra.mxu0 0.0
        %702 = vmatprep.subr.mxu0 0.0
        %703 = vmatpush1.msra.mxu0 0.0
        %704 = vmatprep.subr.mxu0 0.0
        %705 = vmatpush1.msra.mxu0 0.0
        %706 = vmatprep.subr.mxu0 0.0
        %707 = vmatpush1.msra.mxu0 0.0
        %708 = vmatprep.subr.mxu0 0.0
        %709 = vmatpush1.msra.mxu0 0.0
        %710 = vmatprep.subr.mxu0 0.0
        %711 = vmatpush1.msra.mxu0 0.0
        %712 = vmatprep.subr.mxu0 0.0
        %713 = vmatpush1.msra.mxu0 0.0
        %714 = vmatprep.subr.mxu0 0.0
        %715 = vmatpush1.msra.mxu0 0.0
        %716 = vmatprep.subr.mxu0 0.0
        %717 = vmatpush1.msra.mxu0 0.0
        %718 = vmatprep.subr.mxu0 0.0
        %719 = vmatpush1.msra.mxu0 0.0
        %720 = vmatprep.subr.mxu0 0.0
        %721 = vmatpush1.msra.mxu0 0.0
        %722 = vmatprep.subr.mxu0 0.0
        %723 = vmatpush1.msra.mxu0 0.0
        %724 = vmatprep.subr.mxu0 0.0
        %725 = vmatpush1.msra.mxu0 0.0
        %726 = vmatprep.mubr.f32.mxu0 0.0
        %v727 = vand.u32 %v321, 4294901760
        %728 = vmatmul.mubr.f32.gmra.mrb[0].mxu0 %v727
        %v729 = vpop.f32.mrb[0].mxu0
        %v730 = vadd.f32 %v647, %v729
        %v731 = vpop.f32.mrb[0].mxu0
        %732 = vdwg.mxu0
        %733 = vmatprep.subr.mxu0 0.0
        %v734 = vand.u32 %v292, 4294901760
        %735 = vmatpush1.msra.mxu0 %v734
        %736 = vmatprep.subr.mxu0 0.0
        %v737 = vand.u32 %v293, 4294901760
        %738 = vmatpush1.msra.mxu0 %v737
        %739 = vmatprep.subr.mxu0 0.0
        %v740 = vand.u32 %v294, 4294901760
        %741 = vmatpush1.msra.mxu0 %v740
        %742 = vmatprep.subr.mxu0 0.0
        %v743 = vand.u32 %v295, 4294901760
        %744 = vmatpush1.msra.mxu0 %v743
        %745 = vmatprep.subr.mxu0 0.0
        %746 = vmatpush1.msra.mxu0 0.0
        %747 = vmatprep.subr.mxu0 0.0
        %748 = vmatpush1.msra.mxu0 0.0
        %749 = vmatprep.subr.mxu0 0.0
        %750 = vmatpush1.msra.mxu0 0.0
        %751 = vmatprep.subr.mxu0 0.0
        %752 = vmatpush1.msra.mxu0 0.0
        %753 = vmatprep.subr.mxu0 0.0
        %754 = vmatpush1.msra.mxu0 0.0
        %755 = vmatprep.subr.mxu0 0.0
        %756 = vmatpush1.msra.mxu0 0.0
        %757 = vmatprep.subr.mxu0 0.0
        %758 = vmatpush1.msra.mxu0 0.0
        %759 = vmatprep.subr.mxu0 0.0
        %760 = vmatpush1.msra.mxu0 0.0
        %761 = vmatprep.subr.mxu0 0.0
        %762 = vmatpush1.msra.mxu0 0.0
        %763 = vmatprep.subr.mxu0 0.0
        %764 = vmatpush1.msra.mxu0 0.0
        %765 = vmatprep.subr.mxu0 0.0
        %766 = vmatpush1.msra.mxu0 0.0
        %767 = vmatprep.subr.mxu0 0.0
        %768 = vmatpush1.msra.mxu0 0.0
        %769 = vmatprep.subr.mxu0 0.0
        %770 = vmatpush1.msra.mxu0 0.0
        %771 = vmatprep.subr.mxu0 0.0
        %772 = vmatpush1.msra.mxu0 0.0
        %773 = vmatprep.subr.mxu0 0.0
        %774 = vmatpush1.msra.mxu0 0.0
        %775 = vmatprep.subr.mxu0 0.0
        %776 = vmatpush1.msra.mxu0 0.0
        %777 = vmatprep.subr.mxu0 0.0
        %778 = vmatpush1.msra.mxu0 0.0
        %779 = vmatprep.subr.mxu0 0.0
        %780 = vmatpush1.msra.mxu0 0.0
        %781 = vmatprep.subr.mxu0 0.0
        %782 = vmatpush1.msra.mxu0 0.0
        %783 = vmatprep.subr.mxu0 0.0
        %784 = vmatpush1.msra.mxu0 0.0
        %785 = vmatprep.subr.mxu0 0.0
        %786 = vmatpush1.msra.mxu0 0.0
        %787 = vmatprep.subr.mxu0 0.0
        %788 = vmatpush1.msra.mxu0 0.0
        %789 = vmatprep.subr.mxu0 0.0
        %790 = vmatpush1.msra.mxu0 0.0
        %791 = vmatprep.subr.mxu0 0.0
        %792 = vmatpush1.msra.mxu0 0.0
        %793 = vmatprep.subr.mxu0 0.0
        %794 = vmatpush1.msra.mxu0 0.0
        %795 = vmatprep.subr.mxu0 0.0
        %796 = vmatpush1.msra.mxu0 0.0
        %797 = vmatprep.subr.mxu0 0.0
        %798 = vmatpush1.msra.mxu0 0.0
        %799 = vmatprep.subr.mxu0 0.0
        %800 = vmatpush1.msra.mxu0 0.0
        %801 = vmatprep.mubr.f32.mxu0 0.0
        %v802 = vand.u32 %v321, 4294901760
        %803 = vmatmul.mubr.f32.gmra.mrb[0].mxu0 %v802
        %v804 = vpop.f32.mrb[0].mxu0
        %v805 = vadd.f32 %v730, %v804
        %v806 = vpop.f32.mrb[0].mxu0
        %807 = vdwg.mxu0
        %v808 = vmax.f32 %v805, 0.0
        %v809 = vld [vmem:[#allocation2] sm:$0xff]
        %810 = vmatprep.subr.mxu0 0.0
        %v811 = vand.u32 %v297, 4294901760
        %812 = vmatpush1.msra.mxu0 %v811
        %813 = vmatprep.subr.mxu0 0.0
        %v814 = vand.u32 %v298, 4294901760
        %815 = vmatpush1.msra.mxu0 %v814
        %816 = vmatprep.subr.mxu0 0.0
        %v817 = vand.u32 %v299, 4294901760
        %818 = vmatpush1.msra.mxu0 %v817
        %819 = vmatprep.subr.mxu0 0.0
        %v820 = vand.u32 %v300, 4294901760
        %821 = vmatpush1.msra.mxu0 %v820
        %822 = vmatprep.subr.mxu0 0.0
        %v823 = vand.u32 %v301, 4294901760
        %824 = vmatpush1.msra.mxu0 %v823
        %825 = vmatprep.subr.mxu0 0.0
        %v826 = vand.u32 %v302, 4294901760
        %827 = vmatpush1.msra.mxu0 %v826
        %828 = vmatprep.subr.mxu0 0.0
        %v829 = vand.u32 %v303, 4294901760
        %830 = vmatpush1.msra.mxu0 %v829
        %831 = vmatprep.subr.mxu0 0.0
        %v832 = vand.u32 %v304, 4294901760
        %833 = vmatpush1.msra.mxu0 %v832
        %834 = vmatprep.subr.mxu0 0.0
        %v835 = vand.u32 %v305, 4294901760
        %836 = vmatpush1.msra.mxu0 %v835
        %837 = vmatprep.subr.mxu0 0.0
        %v838 = vand.u32 %v306, 4294901760
        %839 = vmatpush1.msra.mxu0 %v838
        %840 = vmatprep.subr.mxu0 0.0
        %v841 = vand.u32 %v307, 4294901760
        %842 = vmatpush1.msra.mxu0 %v841
        %843 = vmatprep.subr.mxu0 0.0
        %v844 = vand.u32 %v308, 4294901760
        %845 = vmatpush1.msra.mxu0 %v844
        %846 = vmatprep.subr.mxu0 0.0
        %v847 = vand.u32 %v309, 4294901760
        %848 = vmatpush1.msra.mxu0 %v847
        %849 = vmatprep.subr.mxu0 0.0
        %v850 = vand.u32 %v310, 4294901760
        %851 = vmatpush1.msra.mxu0 %v850
        %852 = vmatprep.subr.mxu0 0.0
        %v853 = vand.u32 %v311, 4294901760
        %854 = vmatpush1.msra.mxu0 %v853
        %855 = vmatprep.subr.mxu0 0.0
        %v856 = vand.u32 %v312, 4294901760
        %857 = vmatpush1.msra.mxu0 %v856
        %858 = vmatprep.subr.mxu0 0.0
        %859 = vmatpush1.msra.mxu0 0.0
        %860 = vmatprep.subr.mxu0 0.0
        %861 = vmatpush1.msra.mxu0 0.0
        %862 = vmatprep.subr.mxu0 0.0
        %863 = vmatpush1.msra.mxu0 0.0
        %864 = vmatprep.subr.mxu0 0.0
        %865 = vmatpush1.msra.mxu0 0.0
        %866 = vmatprep.subr.mxu0 0.0
        %867 = vmatpush1.msra.mxu0 0.0
        %868 = vmatprep.subr.mxu0 0.0
        %869 = vmatpush1.msra.mxu0 0.0
        %870 = vmatprep.subr.mxu0 0.0
        %871 = vmatpush1.msra.mxu0 0.0
        %872 = vmatprep.subr.mxu0 0.0
        %873 = vmatpush1.msra.mxu0 0.0
        %874 = vmatprep.subr.mxu0 0.0
        %875 = vmatpush1.msra.mxu0 0.0
        %876 = vmatprep.subr.mxu0 0.0
        %877 = vmatpush1.msra.mxu0 0.0
        %878 = vmatprep.subr.mxu0 0.0
        %879 = vmatpush1.msra.mxu0 0.0
        %880 = vmatprep.subr.mxu0 0.0
        %881 = vmatpush1.msra.mxu0 0.0
        %882 = vmatprep.subr.mxu0 0.0
        %883 = vmatpush1.msra.mxu0 0.0
        %884 = vmatprep.subr.mxu0 0.0
        %885 = vmatpush1.msra.mxu0 0.0
        %886 = vmatprep.subr.mxu0 0.0
        %887 = vmatpush1.msra.mxu0 0.0
        %888 = vmatprep.subr.mxu0 0.0
        %889 = vmatpush1.msra.mxu0 0.0
        %890 = vmatprep.mubr.f32.mxu0 0.0
        %v891 = vand.u32 %v808, 4294901760
        %v892 = vsub.f32 %v808, %v891
        %v893 = vand.u32 %v892, 4294901760
        %v894 = vsub.f32 %v892, %v893
        %v895 = vand.u32 %v894, 4294901760
        %896 = vmatmul.mubr.f32.gmra.mrb[0].mxu0 %v895
        %v897 = vpop.f32.mrb[0].mxu0
        %v898 = vadd.f32 0.0, %v897
        %v899 = vpop.f32.mrb[0].mxu0
        %900 = vdwg.mxu0
        %901 = vmatprep.subr.mxu0 0.0
        %v902 = vand.u32 %v297, 4294901760
        %v903 = vsub.f32 %v297, %v902
        %v904 = vand.u32 %v903, 4294901760
        %v905 = vsub.f32 %v903, %v904
        %v906 = vand.u32 %v905, 4294901760
        %907 = vmatpush1.msra.mxu0 %v906
        %908 = vmatprep.subr.mxu0 0.0
        %v909 = vand.u32 %v298, 4294901760
        %v910 = vsub.f32 %v298, %v909
        %v911 = vand.u32 %v910, 4294901760
        %v912 = vsub.f32 %v910, %v911
        %v913 = vand.u32 %v912, 4294901760
        %914 = vmatpush1.msra.mxu0 %v913
        %915 = vmatprep.subr.mxu0 0.0
        %v916 = vand.u32 %v299, 4294901760
        %v917 = vsub.f32 %v299, %v916
        %v918 = vand.u32 %v917, 4294901760
        %v919 = vsub.f32 %v917, %v918
        %v920 = vand.u32 %v919, 4294901760
        %921 = vmatpush1.msra.mxu0 %v920
        %922 = vmatprep.subr.mxu0 0.0
        %v923 = vand.u32 %v300, 4294901760
        %v924 = vsub.f32 %v300, %v923
        %v925 = vand.u32 %v924, 4294901760
        %v926 = vsub.f32 %v924, %v925
        %v927 = vand.u32 %v926, 4294901760
        %928 = vmatpush1.msra.mxu0 %v927
        %929 = vmatprep.subr.mxu0 0.0
        %v930 = vand.u32 %v301, 4294901760
        %v931 = vsub.f32 %v301, %v930
        %v932 = vand.u32 %v931, 4294901760
        %v933 = vsub.f32 %v931, %v932
        %v934 = vand.u32 %v933, 4294901760
        %935 = vmatpush1.msra.mxu0 %v934
        %936 = vmatprep.subr.mxu0 0.0
        %v937 = vand.u32 %v302, 4294901760
        %v938 = vsub.f32 %v302, %v937
        %v939 = vand.u32 %v938, 4294901760
        %v940 = vsub.f32 %v938, %v939
        %v941 = vand.u32 %v940, 4294901760
        %942 = vmatpush1.msra.mxu0 %v941
        %943 = vmatprep.subr.mxu0 0.0
        %v944 = vand.u32 %v303, 4294901760
        %v945 = vsub.f32 %v303, %v944
        %v946 = vand.u32 %v945, 4294901760
        %v947 = vsub.f32 %v945, %v946
        %v948 = vand.u32 %v947, 4294901760
        %949 = vmatpush1.msra.mxu0 %v948
        %950 = vmatprep.subr.mxu0 0.0
        %v951 = vand.u32 %v304, 4294901760
        %v952 = vsub.f32 %v304, %v951
        %v953 = vand.u32 %v952, 4294901760
        %v954 = vsub.f32 %v952, %v953
        %v955 = vand.u32 %v954, 4294901760
        %956 = vmatpush1.msra.mxu0 %v955
        %957 = vmatprep.subr.mxu0 0.0
        %v958 = vand.u32 %v305, 4294901760
        %v959 = vsub.f32 %v305, %v958
        %v960 = vand.u32 %v959, 4294901760
        %v961 = vsub.f32 %v959, %v960
        %v962 = vand.u32 %v961, 4294901760
        %963 = vmatpush1.msra.mxu0 %v962
        %964 = vmatprep.subr.mxu0 0.0
        %v965 = vand.u32 %v306, 4294901760
        %v966 = vsub.f32 %v306, %v965
        %v967 = vand.u32 %v966, 4294901760
        %v968 = vsub.f32 %v966, %v967
        %v969 = vand.u32 %v968, 4294901760
        %970 = vmatpush1.msra.mxu0 %v969
        %971 = vmatprep.subr.mxu0 0.0
        %v972 = vand.u32 %v307, 4294901760
        %v973 = vsub.f32 %v307, %v972
        %v974 = vand.u32 %v973, 4294901760
        %v975 = vsub.f32 %v973, %v974
        %v976 = vand.u32 %v975, 4294901760
        %977 = vmatpush1.msra.mxu0 %v976
        %978 = vmatprep.subr.mxu0 0.0
        %v979 = vand.u32 %v308, 4294901760
        %v980 = vsub.f32 %v308, %v979
        %v981 = vand.u32 %v980, 4294901760
        %v982 = vsub.f32 %v980, %v981
        %v983 = vand.u32 %v982, 4294901760
        %984 = vmatpush1.msra.mxu0 %v983
        %985 = vmatprep.subr.mxu0 0.0
        %v986 = vand.u32 %v309, 4294901760
        %v987 = vsub.f32 %v309, %v986
        %v988 = vand.u32 %v987, 4294901760
        %v989 = vsub.f32 %v987, %v988
        %v990 = vand.u32 %v989, 4294901760
        %991 = vmatpush1.msra.mxu0 %v990
        %992 = vmatprep.subr.mxu0 0.0
        %v993 = vand.u32 %v310, 4294901760
        %v994 = vsub.f32 %v310, %v993
        %v995 = vand.u32 %v994, 4294901760
        %v996 = vsub.f32 %v994, %v995
        %v997 = vand.u32 %v996, 4294901760
        %998 = vmatpush1.msra.mxu0 %v997
        %999 = vmatprep.subr.mxu0 0.0
        %v1000 = vand.u32 %v311, 4294901760
        %v1001 = vsub.f32 %v311, %v1000
        %v1002 = vand.u32 %v1001, 4294901760
        %v1003 = vsub.f32 %v1001, %v1002
        %v1004 = vand.u32 %v1003, 4294901760
        %1005 = vmatpush1.msra.mxu0 %v1004
        %1006 = vmatprep.subr.mxu0 0.0
        %v1007 = vand.u32 %v312, 4294901760
        %v1008 = vsub.f32 %v312, %v1007
        %v1009 = vand.u32 %v1008, 4294901760
        %v1010 = vsub.f32 %v1008, %v1009
        %v1011 = vand.u32 %v1010, 4294901760
        %1012 = vmatpush1.msra.mxu0 %v1011
        %1013 = vmatprep.subr.mxu0 0.0
        %1014 = vmatpush1.msra.mxu0 0.0
        %1015 = vmatprep.subr.mxu0 0.0
        %1016 = vmatpush1.msra.mxu0 0.0
        %1017 = vmatprep.subr.mxu0 0.0
        %1018 = vmatpush1.msra.mxu0 0.0
        %1019 = vmatprep.subr.mxu0 0.0
        %1020 = vmatpush1.msra.mxu0 0.0
        %1021 = vmatprep.subr.mxu0 0.0
        %1022 = vmatpush1.msra.mxu0 0.0
        %1023 = vmatprep.subr.mxu0 0.0
        %1024 = vmatpush1.msra.mxu0 0.0
        %1025 = vmatprep.subr.mxu0 0.0
        %1026 = vmatpush1.msra.mxu0 0.0
        %1027 = vmatprep.subr.mxu0 0.0
        %1028 = vmatpush1.msra.mxu0 0.0
        %1029 = vmatprep.subr.mxu0 0.0
        %1030 = vmatpush1.msra.mxu0 0.0
        %1031 = vmatprep.subr.mxu0 0.0
        %1032 = vmatpush1.msra.mxu0 0.0
        %1033 = vmatprep.subr.mxu0 0.0
        %1034 = vmatpush1.msra.mxu0 0.0
        %1035 = vmatprep.subr.mxu0 0.0
        %1036 = vmatpush1.msra.mxu0 0.0
        %1037 = vmatprep.subr.mxu0 0.0
        %1038 = vmatpush1.msra.mxu0 0.0
        %1039 = vmatprep.subr.mxu0 0.0
        %1040 = vmatpush1.msra.mxu0 0.0
        %1041 = vmatprep.subr.mxu0 0.0
        %1042 = vmatpush1.msra.mxu0 0.0
        %1043 = vmatprep.subr.mxu0 0.0
        %1044 = vmatpush1.msra.mxu0 0.0
        %1045 = vmatprep.mubr.f32.mxu0 0.0
        %v1046 = vand.u32 %v808, 4294901760
        %1047 = vmatmul.mubr.f32.gmra.mrb[0].mxu0 %v1046
        %v1048 = vpop.f32.mrb[0].mxu0
        %v1049 = vadd.f32 %v898, %v1048
        %v1050 = vpop.f32.mrb[0].mxu0
        %1051 = vdwg.mxu0
        %1052 = vmatprep.subr.mxu0 0.0
        %v1053 = vand.u32 %v297, 4294901760
        %v1054 = vsub.f32 %v297, %v1053
        %1055 = vmatpush1.msra.mxu0 %v1054
        %1056 = vmatprep.subr.mxu0 0.0
        %v1057 = vand.u32 %v298, 4294901760
        %v1058 = vsub.f32 %v298, %v1057
        %1059 = vmatpush1.msra.mxu0 %v1058
        %1060 = vmatprep.subr.mxu0 0.0
        %v1061 = vand.u32 %v299, 4294901760
        %v1062 = vsub.f32 %v299, %v1061
        %1063 = vmatpush1.msra.mxu0 %v1062
        %1064 = vmatprep.subr.mxu0 0.0
        %v1065 = vand.u32 %v300, 4294901760
        %v1066 = vsub.f32 %v300, %v1065
        %1067 = vmatpush1.msra.mxu0 %v1066
        %1068 = vmatprep.subr.mxu0 0.0
        %v1069 = vand.u32 %v301, 4294901760
        %v1070 = vsub.f32 %v301, %v1069
        %1071 = vmatpush1.msra.mxu0 %v1070
        %1072 = vmatprep.subr.mxu0 0.0
        %v1073 = vand.u32 %v302, 4294901760
        %v1074 = vsub.f32 %v302, %v1073
        %1075 = vmatpush1.msra.mxu0 %v1074
        %1076 = vmatprep.subr.mxu0 0.0
        %v1077 = vand.u32 %v303, 4294901760
        %v1078 = vsub.f32 %v303, %v1077
        %1079 = vmatpush1.msra.mxu0 %v1078
        %1080 = vmatprep.subr.mxu0 0.0
        %v1081 = vand.u32 %v304, 4294901760
        %v1082 = vsub.f32 %v304, %v1081
        %1083 = vmatpush1.msra.mxu0 %v1082
        %1084 = vmatprep.subr.mxu0 0.0
        %v1085 = vand.u32 %v305, 4294901760
        %v1086 = vsub.f32 %v305, %v1085
        %1087 = vmatpush1.msra.mxu0 %v1086
        %1088 = vmatprep.subr.mxu0 0.0
        %v1089 = vand.u32 %v306, 4294901760
        %v1090 = vsub.f32 %v306, %v1089
        %1091 = vmatpush1.msra.mxu0 %v1090
        %1092 = vmatprep.subr.mxu0 0.0
        %v1093 = vand.u32 %v307, 4294901760
        %v1094 = vsub.f32 %v307, %v1093
        %1095 = vmatpush1.msra.mxu0 %v1094
        %1096 = vmatprep.subr.mxu0 0.0
        %v1097 = vand.u32 %v308, 4294901760
        %v1098 = vsub.f32 %v308, %v1097
        %1099 = vmatpush1.msra.mxu0 %v1098
        %1100 = vmatprep.subr.mxu0 0.0
        %v1101 = vand.u32 %v309, 4294901760
        %v1102 = vsub.f32 %v309, %v1101
        %1103 = vmatpush1.msra.mxu0 %v1102
        %1104 = vmatprep.subr.mxu0 0.0
        %v1105 = vand.u32 %v310, 4294901760
        %v1106 = vsub.f32 %v310, %v1105
        %1107 = vmatpush1.msra.mxu0 %v1106
        %1108 = vmatprep.subr.mxu0 0.0
        %v1109 = vand.u32 %v311, 4294901760
        %v1110 = vsub.f32 %v311, %v1109
        %1111 = vmatpush1.msra.mxu0 %v1110
        %1112 = vmatprep.subr.mxu0 0.0
        %v1113 = vand.u32 %v312, 4294901760
        %v1114 = vsub.f32 %v312, %v1113
        %1115 = vmatpush1.msra.mxu0 %v1114
        %1116 = vmatprep.subr.mxu0 0.0
        %1117 = vmatpush1.msra.mxu0 0.0
        %1118 = vmatprep.subr.mxu0 0.0
        %1119 = vmatpush1.msra.mxu0 0.0
        %1120 = vmatprep.subr.mxu0 0.0
        %1121 = vmatpush1.msra.mxu0 0.0
        %1122 = vmatprep.subr.mxu0 0.0
        %1123 = vmatpush1.msra.mxu0 0.0
        %1124 = vmatprep.subr.mxu0 0.0
        %1125 = vmatpush1.msra.mxu0 0.0
        %1126 = vmatprep.subr.mxu0 0.0
        %1127 = vmatpush1.msra.mxu0 0.0
        %1128 = vmatprep.subr.mxu0 0.0
        %1129 = vmatpush1.msra.mxu0 0.0
        %1130 = vmatprep.subr.mxu0 0.0
        %1131 = vmatpush1.msra.mxu0 0.0
        %1132 = vmatprep.subr.mxu0 0.0
        %1133 = vmatpush1.msra.mxu0 0.0
        %1134 = vmatprep.subr.mxu0 0.0
        %1135 = vmatpush1.msra.mxu0 0.0
        %1136 = vmatprep.subr.mxu0 0.0
        %1137 = vmatpush1.msra.mxu0 0.0
        %1138 = vmatprep.subr.mxu0 0.0
        %1139 = vmatpush1.msra.mxu0 0.0
        %1140 = vmatprep.subr.mxu0 0.0
        %1141 = vmatpush1.msra.mxu0 0.0
        %1142 = vmatprep.subr.mxu0 0.0
        %1143 = vmatpush1.msra.mxu0 0.0
        %1144 = vmatprep.subr.mxu0 0.0
        %1145 = vmatpush1.msra.mxu0 0.0
        %1146 = vmatprep.subr.mxu0 0.0
        %1147 = vmatpush1.msra.mxu0 0.0
        %1148 = vmatprep.mubr.f32.mxu0 0.0
        %v1149 = vand.u32 %v808, 4294901760
        %v1150 = vsub.f32 %v808, %v1149
        %1151 = vmatmul.mubr.f32.gmra.mrb[0].mxu0 %v1150
        %v1152 = vpop.f32.mrb[0].mxu0
        %v1153 = vadd.f32 %v1049, %v1152
        %v1154 = vpop.f32.mrb[0].mxu0
        %1155 = vdwg.mxu0
        %1156 = vmatprep.subr.mxu0 0.0
        %v1157 = vand.u32 %v297, 4294901760
        %1158 = vmatpush1.msra.mxu0 %v1157
        %1159 = vmatprep.subr.mxu0 0.0
        %v1160 = vand.u32 %v298, 4294901760
        %1161 = vmatpush1.msra.mxu0 %v1160
        %1162 = vmatprep.subr.mxu0 0.0
        %v1163 = vand.u32 %v299, 4294901760
        %1164 = vmatpush1.msra.mxu0 %v1163
        %1165 = vmatprep.subr.mxu0 0.0
        %v1166 = vand.u32 %v300, 4294901760
        %1167 = vmatpush1.msra.mxu0 %v1166
        %1168 = vmatprep.subr.mxu0 0.0
        %v1169 = vand.u32 %v301, 4294901760
        %1170 = vmatpush1.msra.mxu0 %v1169
        %1171 = vmatprep.subr.mxu0 0.0
        %v1172 = vand.u32 %v302, 4294901760
        %1173 = vmatpush1.msra.mxu0 %v1172
        %1174 = vmatprep.subr.mxu0 0.0
        %v1175 = vand.u32 %v303, 4294901760
        %1176 = vmatpush1.msra.mxu0 %v1175
        %1177 = vmatprep.subr.mxu0 0.0
        %v1178 = vand.u32 %v304, 4294901760
        %1179 = vmatpush1.msra.mxu0 %v1178
        %1180 = vmatprep.subr.mxu0 0.0
        %v1181 = vand.u32 %v305, 4294901760
        %1182 = vmatpush1.msra.mxu0 %v1181
        %1183 = vmatprep.subr.mxu0 0.0
        %v1184 = vand.u32 %v306, 4294901760
        %1185 = vmatpush1.msra.mxu0 %v1184
        %1186 = vmatprep.subr.mxu0 0.0
        %v1187 = vand.u32 %v307, 4294901760
        %1188 = vmatpush1.msra.mxu0 %v1187
        %1189 = vmatprep.subr.mxu0 0.0
        %v1190 = vand.u32 %v308, 4294901760
        %1191 = vmatpush1.msra.mxu0 %v1190
        %1192 = vmatprep.subr.mxu0 0.0
        %v1193 = vand.u32 %v309, 4294901760
        %1194 = vmatpush1.msra.mxu0 %v1193
        %1195 = vmatprep.subr.mxu0 0.0
        %v1196 = vand.u32 %v310, 4294901760
        %1197 = vmatpush1.msra.mxu0 %v1196
        %1198 = vmatprep.subr.mxu0 0.0
        %v1199 = vand.u32 %v311, 4294901760
        %1200 = vmatpush1.msra.mxu0 %v1199
        %1201 = vmatprep.subr.mxu0 0.0
        %v1202 = vand.u32 %v312, 4294901760
        %1203 = vmatpush1.msra.mxu0 %v1202
        %1204 = vmatprep.subr.mxu0 0.0
        %1205 = vmatpush1.msra.mxu0 0.0
        %1206 = vmatprep.subr.mxu0 0.0
        %1207 = vmatpush1.msra.mxu0 0.0
        %1208 = vmatprep.subr.mxu0 0.0
        %1209 = vmatpush1.msra.mxu0 0.0
        %1210 = vmatprep.subr.mxu0 0.0
        %1211 = vmatpush1.msra.mxu0 0.0
        %1212 = vmatprep.subr.mxu0 0.0
        %1213 = vmatpush1.msra.mxu0 0.0
        %1214 = vmatprep.subr.mxu0 0.0
        %1215 = vmatpush1.msra.mxu0 0.0
        %1216 = vmatprep.subr.mxu0 0.0
        %1217 = vmatpush1.msra.mxu0 0.0
        %1218 = vmatprep.subr.mxu0 0.0
        %1219 = vmatpush1.msra.mxu0 0.0
        %1220 = vmatprep.subr.mxu0 0.0
        %1221 = vmatpush1.msra.mxu0 0.0
        %1222 = vmatprep.subr.mxu0 0.0
        %1223 = vmatpush1.msra.mxu0 0.0
        %1224 = vmatprep.subr.mxu0 0.0
        %1225 = vmatpush1.msra.mxu0 0.0
        %1226 = vmatprep.subr.mxu0 0.0
        %1227 = vmatpush1.msra.mxu0 0.0
        %1228 = vmatprep.subr.mxu0 0.0
        %1229 = vmatpush1.msra.mxu0 0.0
        %1230 = vmatprep.subr.mxu0 0.0
        %1231 = vmatpush1.msra.mxu0 0.0
        %1232 = vmatprep.subr.mxu0 0.0
        %1233 = vmatpush1.msra.mxu0 0.0
        %1234 = vmatprep.subr.mxu0 0.0
        %1235 = vmatpush1.msra.mxu0 0.0
        %1236 = vmatprep.mubr.f32.mxu0 0.0
        %v1237 = vand.u32 %v808, 4294901760
        %v1238 = vsub.f32 %v808, %v1237
        %v1239 = vand.u32 %v1238, 4294901760
        %1240 = vmatmul.mubr.f32.gmra.mrb[0].mxu0 %v1239
        %v1241 = vpop.f32.mrb[0].mxu0
        %v1242 = vadd.f32 %v1153, %v1241
        %v1243 = vpop.f32.mrb[0].mxu0
        %1244 = vdwg.mxu0
        %1245 = vmatprep.subr.mxu0 0.0
        %v1246 = vand.u32 %v297, 4294901760
        %v1247 = vsub.f32 %v297, %v1246
        %v1248 = vand.u32 %v1247, 4294901760
        %1249 = vmatpush1.msra.mxu0 %v1248
        %1250 = vmatprep.subr.mxu0 0.0
        %v1251 = vand.u32 %v298, 4294901760
        %v1252 = vsub.f32 %v298, %v1251
        %v1253 = vand.u32 %v1252, 4294901760
        %1254 = vmatpush1.msra.mxu0 %v1253
        %1255 = vmatprep.subr.mxu0 0.0
        %v1256 = vand.u32 %v299, 4294901760
        %v1257 = vsub.f32 %v299, %v1256
        %v1258 = vand.u32 %v1257, 4294901760
        %1259 = vmatpush1.msra.mxu0 %v1258
        %1260 = vmatprep.subr.mxu0 0.0
        %v1261 = vand.u32 %v300, 4294901760
        %v1262 = vsub.f32 %v300, %v1261
        %v1263 = vand.u32 %v1262, 4294901760
        %1264 = vmatpush1.msra.mxu0 %v1263
        %1265 = vmatprep.subr.mxu0 0.0
        %v1266 = vand.u32 %v301, 4294901760
        %v1267 = vsub.f32 %v301, %v1266
        %v1268 = vand.u32 %v1267, 4294901760
        %1269 = vmatpush1.msra.mxu0 %v1268
        %1270 = vmatprep.subr.mxu0 0.0
        %v1271 = vand.u32 %v302, 4294901760
        %v1272 = vsub.f32 %v302, %v1271
        %v1273 = vand.u32 %v1272, 4294901760
        %1274 = vmatpush1.msra.mxu0 %v1273
        %1275 = vmatprep.subr.mxu0 0.0
        %v1276 = vand.u32 %v303, 4294901760
        %v1277 = vsub.f32 %v303, %v1276
        %v1278 = vand.u32 %v1277, 4294901760
        %1279 = vmatpush1.msra.mxu0 %v1278
        %1280 = vmatprep.subr.mxu0 0.0
        %v1281 = vand.u32 %v304, 4294901760
        %v1282 = vsub.f32 %v304, %v1281
        %v1283 = vand.u32 %v1282, 4294901760
        %1284 = vmatpush1.msra.mxu0 %v1283
        %1285 = vmatprep.subr.mxu0 0.0
        %v1286 = vand.u32 %v305, 4294901760
        %v1287 = vsub.f32 %v305, %v1286
        %v1288 = vand.u32 %v1287, 4294901760
        %1289 = vmatpush1.msra.mxu0 %v1288
        %1290 = vmatprep.subr.mxu0 0.0
        %v1291 = vand.u32 %v306, 4294901760
        %v1292 = vsub.f32 %v306, %v1291
        %v1293 = vand.u32 %v1292, 4294901760
        %1294 = vmatpush1.msra.mxu0 %v1293
        %1295 = vmatprep.subr.mxu0 0.0
        %v1296 = vand.u32 %v307, 4294901760
        %v1297 = vsub.f32 %v307, %v1296
        %v1298 = vand.u32 %v1297, 4294901760
        %1299 = vmatpush1.msra.mxu0 %v1298
        %1300 = vmatprep.subr.mxu0 0.0
        %v1301 = vand.u32 %v308, 4294901760
        %v1302 = vsub.f32 %v308, %v1301
        %v1303 = vand.u32 %v1302, 4294901760
        %1304 = vmatpush1.msra.mxu0 %v1303
        %1305 = vmatprep.subr.mxu0 0.0
        %v1306 = vand.u32 %v309, 4294901760
        %v1307 = vsub.f32 %v309, %v1306
        %v1308 = vand.u32 %v1307, 4294901760
        %1309 = vmatpush1.msra.mxu0 %v1308
        %1310 = vmatprep.subr.mxu0 0.0
        %v1311 = vand.u32 %v310, 4294901760
        %v1312 = vsub.f32 %v310, %v1311
        %v1313 = vand.u32 %v1312, 4294901760
        %1314 = vmatpush1.msra.mxu0 %v1313
        %1315 = vmatprep.subr.mxu0 0.0
        %v1316 = vand.u32 %v311, 4294901760
        %v1317 = vsub.f32 %v311, %v1316
        %v1318 = vand.u32 %v1317, 4294901760
        %1319 = vmatpush1.msra.mxu0 %v1318
        %1320 = vmatprep.subr.mxu0 0.0
        %v1321 = vand.u32 %v312, 4294901760
        %v1322 = vsub.f32 %v312, %v1321
        %v1323 = vand.u32 %v1322, 4294901760
        %1324 = vmatpush1.msra.mxu0 %v1323
        %1325 = vmatprep.subr.mxu0 0.0
        %1326 = vmatpush1.msra.mxu0 0.0
        %1327 = vmatprep.subr.mxu0 0.0
        %1328 = vmatpush1.msra.mxu0 0.0
        %1329 = vmatprep.subr.mxu0 0.0
        %1330 = vmatpush1.msra.mxu0 0.0
        %1331 = vmatprep.subr.mxu0 0.0
        %1332 = vmatpush1.msra.mxu0 0.0
        %1333 = vmatprep.subr.mxu0 0.0
        %1334 = vmatpush1.msra.mxu0 0.0
        %1335 = vmatprep.subr.mxu0 0.0
        %1336 = vmatpush1.msra.mxu0 0.0
        %1337 = vmatprep.subr.mxu0 0.0
        %1338 = vmatpush1.msra.mxu0 0.0
        %1339 = vmatprep.subr.mxu0 0.0
        %1340 = vmatpush1.msra.mxu0 0.0
        %1341 = vmatprep.subr.mxu0 0.0
        %1342 = vmatpush1.msra.mxu0 0.0
        %1343 = vmatprep.subr.mxu0 0.0
        %1344 = vmatpush1.msra.mxu0 0.0
        %1345 = vmatprep.subr.mxu0 0.0
        %1346 = vmatpush1.msra.mxu0 0.0
        %1347 = vmatprep.subr.mxu0 0.0
        %1348 = vmatpush1.msra.mxu0 0.0
        %1349 = vmatprep.subr.mxu0 0.0
        %1350 = vmatpush1.msra.mxu0 0.0
        %1351 = vmatprep.subr.mxu0 0.0
        %1352 = vmatpush1.msra.mxu0 0.0
        %1353 = vmatprep.subr.mxu0 0.0
        %1354 = vmatpush1.msra.mxu0 0.0
        %1355 = vmatprep.subr.mxu0 0.0
        %1356 = vmatpush1.msra.mxu0 0.0
        %1357 = vmatprep.mubr.f32.mxu0 0.0
        %v1358 = vand.u32 %v808, 4294901760
        %1359 = vmatmul.mubr.f32.gmra.mrb[0].mxu0 %v1358
        %v1360 = vpop.f32.mrb[0].mxu0
        %v1361 = vadd.f32 %v1242, %v1360
        %v1362 = vpop.f32.mrb[0].mxu0
        %1363 = vdwg.mxu0
        %1364 = vmatprep.subr.mxu0 0.0
        %v1365 = vand.u32 %v297, 4294901760
        %1366 = vmatpush1.msra.mxu0 %v1365
        %1367 = vmatprep.subr.mxu0 0.0
        %v1368 = vand.u32 %v298, 4294901760
        %1369 = vmatpush1.msra.mxu0 %v1368
        %1370 = vmatprep.subr.mxu0 0.0
        %v1371 = vand.u32 %v299, 4294901760
        %1372 = vmatpush1.msra.mxu0 %v1371
        %1373 = vmatprep.subr.mxu0 0.0
        %v1374 = vand.u32 %v300, 4294901760
        %1375 = vmatpush1.msra.mxu0 %v1374
        %1376 = vmatprep.subr.mxu0 0.0
        %v1377 = vand.u32 %v301, 4294901760
        %1378 = vmatpush1.msra.mxu0 %v1377
        %1379 = vmatprep.subr.mxu0 0.0
        %v1380 = vand.u32 %v302, 4294901760
        %1381 = vmatpush1.msra.mxu0 %v1380
        %1382 = vmatprep.subr.mxu0 0.0
        %v1383 = vand.u32 %v303, 4294901760
        %1384 = vmatpush1.msra.mxu0 %v1383
        %1385 = vmatprep.subr.mxu0 0.0
        %v1386 = vand.u32 %v304, 4294901760
        %1387 = vmatpush1.msra.mxu0 %v1386
        %1388 = vmatprep.subr.mxu0 0.0
        %v1389 = vand.u32 %v305, 4294901760
        %1390 = vmatpush1.msra.mxu0 %v1389
        %1391 = vmatprep.subr.mxu0 0.0
        %v1392 = vand.u32 %v306, 4294901760
        %1393 = vmatpush1.msra.mxu0 %v1392
        %1394 = vmatprep.subr.mxu0 0.0
        %v1395 = vand.u32 %v307, 4294901760
        %1396 = vmatpush1.msra.mxu0 %v1395
        %1397 = vmatprep.subr.mxu0 0.0
        %v1398 = vand.u32 %v308, 4294901760
        %1399 = vmatpush1.msra.mxu0 %v1398
        %1400 = vmatprep.subr.mxu0 0.0
        %v1401 = vand.u32 %v309, 4294901760
        %1402 = vmatpush1.msra.mxu0 %v1401
        %1403 = vmatprep.subr.mxu0 0.0
        %v1404 = vand.u32 %v310, 4294901760
        %1405 = vmatpush1.msra.mxu0 %v1404
        %1406 = vmatprep.subr.mxu0 0.0
        %v1407 = vand.u32 %v311, 4294901760
        %1408 = vmatpush1.msra.mxu0 %v1407
        %1409 = vmatprep.subr.mxu0 0.0
        %v1410 = vand.u32 %v312, 4294901760
        %1411 = vmatpush1.msra.mxu0 %v1410
        %1412 = vmatprep.subr.mxu0 0.0
        %1413 = vmatpush1.msra.mxu0 0.0
        %1414 = vmatprep.subr.mxu0 0.0
        %1415 = vmatpush1.msra.mxu0 0.0
        %1416 = vmatprep.subr.mxu0 0.0
        %1417 = vmatpush1.msra.mxu0 0.0
        %1418 = vmatprep.subr.mxu0 0.0
        %1419 = vmatpush1.msra.mxu0 0.0
        %1420 = vmatprep.subr.mxu0 0.0
        %1421 = vmatpush1.msra.mxu0 0.0
        %1422 = vmatprep.subr.mxu0 0.0
        %1423 = vmatpush1.msra.mxu0 0.0
        %1424 = vmatprep.subr.mxu0 0.0
        %1425 = vmatpush1.msra.mxu0 0.0
        %1426 = vmatprep.subr.mxu0 0.0
        %1427 = vmatpush1.msra.mxu0 0.0
        %1428 = vmatprep.subr.mxu0 0.0
        %1429 = vmatpush1.msra.mxu0 0.0
        %1430 = vmatprep.subr.mxu0 0.0
        %1431 = vmatpush1.msra.mxu0 0.0
        %1432 = vmatprep.subr.mxu0 0.0
        %1433 = vmatpush1.msra.mxu0 0.0
        %1434 = vmatprep.subr.mxu0 0.0
        %1435 = vmatpush1.msra.mxu0 0.0
        %1436 = vmatprep.subr.mxu0 0.0
        %1437 = vmatpush1.msra.mxu0 0.0
        %1438 = vmatprep.subr.mxu0 0.0
        %1439 = vmatpush1.msra.mxu0 0.0
        %1440 = vmatprep.subr.mxu0 0.0
        %1441 = vmatpush1.msra.mxu0 0.0
        %1442 = vmatprep.subr.mxu0 0.0
        %1443 = vmatpush1.msra.mxu0 0.0
        %1444 = vmatprep.mubr.f32.mxu0 0.0
        %v1445 = vand.u32 %v808, 4294901760
        %1446 = vmatmul.mubr.f32.gmra.mrb[0].mxu0 %v1445
        %v1447 = vpop.f32.mrb[0].mxu0
        %v1448 = vadd.f32 %v1361, %v1447
        %v1449 = vpop.f32.mrb[0].mxu0
        %1450 = vdwg.mxu0
        %v1451 = vadd.f32 %v809, %v1448
        %1452 = vst.msk [vmem:[#allocation2] sm:$0xff] %vm319, %v1451
        // Predicated region
        $region45: #{tpu_custom_call.1} parent=39 // pred_check
          %p1453 = pneg %p285
        $region46: #{tpu_custom_call.1} parent=39 // pred_check_branch
          %1455 = sbr.rel (%p1453) target = $region48
        $region47: #{tpu_custom_call.1} parent=39 // pred_region
          %v1456 = vld [vmem:[#allocation2] sm:$0xff]
          %v1457 = vld [vmem:[%s4] sm:$0x1]
          %v1459 = vlaneseq
          %v1460 = vshrl.u32 %v1459, 7
          %v1461 = vsub.s32 0, %v1460
          %v1462 = vrot.slane %v1457, %v1461
          %v1464 = vadd.f32 %v1456, %v1462
          %1465 = vst.msk [vmem:[%s267] sm:$0xff] %vm319, %v1464
        $region48: #{tpu_custom_call.1} parent=39 // pred_fallthru
          _
        %s1466 = sand.u32 %s164, 1
        %s1467 = scalar_lea.sflag [#allocation4], %s1466
        %s1468 = sand.u32 %s164, 1
        %s1469 = smul.addr %s1468, 8
        %s1470 = scalar_lea.vmem [#allocation3], %s1469
        // Predicated region
        $region49: #{tpu_custom_call.1} parent=39 // pred_check
          %p1471 = pneg %p174
        $region50: #{tpu_custom_call.1} parent=39 // pred_check_branch
          %1473 = sbr.rel (%p1471) target = $region52
        $region51: #{tpu_custom_call.1} parent=39 // pred_region
          %s1475 = ssub.s32 128, 128
          %1476 = vsyncadd %s1467, %s1475
          %s1477 = smul.addr %s23, 128
          %s1478 = scalar_lea.hbm %s5, %s1477
          %s1480 = sshll.u32 %s1470, 4
          %s1481 = int_to_ptr.vmem [resolvable:$true] %s1480
          %1483 = dma.vmem_to_hbm [thread:$0]  %s1481, 128, %s1478, %s1467
        $region52: #{tpu_custom_call.1} parent=39 // pred_fallthru
          _
      $region40: #{tpu_custom_call.1} parent=5 // pred_fallthru
        _
      %p1484 = scmp.le.s32.totalorder 2, %s14
      // Predicated region
      $region53: #{tpu_custom_call.1} parent=5 // pred_check
        %p1485 = pneg %p1484
      $region54: #{tpu_custom_call.1} parent=5 // pred_check_branch
        %1487 = sbr.rel (%p1485) target = $region56
      $region55: #{tpu_custom_call.1} parent=5 // pred_region
        %s1488 = ssub.s32 %s14, 2
        // Predicated region
        $region57: #{tpu_custom_call.1} parent=55 // pred_check
          %p1489 = pneg %p180
        $region58: #{tpu_custom_call.1} parent=55 // pred_check_branch
          %1491 = sbr.rel (%p1489) target = $region60
        $region59: #{tpu_custom_call.1} parent=55 // pred_region
          %s1492 = sand.u32 %s165, 1
          %s1493 = scalar_lea.sflag [#allocation4], %s1492
          %s1494 = sand.u32 %s165, 1
          %s1495 = smul.addr %s1494, 8
          %s1496 = scalar_lea.vmem [#allocation3], %s1495
          %1497 = dma.done %s1493, 128
        $region60: #{tpu_custom_call.1} parent=55 // pred_fallthru
          _
      $region56: #{tpu_custom_call.1} parent=5 // pred_fallthru
        _
    $region6: #{tpu_custom_call.1} parent=1 // loop_footer
      %s18 = sadd.s32 1, %s14
    $region7: #{tpu_custom_call.1} parent=1 // loop_footer_branch
      %13 = sbr.rel target = $region3
    $region8: #{tpu_custom_call.1} parent=1 // loop_exit
      _
    %1498 = vsyncpa [#allocation4], 1
    %s1499 = scalar_lea.sflag [#allocation4], 1
    %1500 = vsyncpa %s1499, 1

</llo_original>
